<compile_context>
chip_gen: v7x
topology: tpu7x:2x2x1
jax: 0.10.0
libtpu: 0.0.40
codegen_flags: <defaults>
</compile_context>

<pallas_src>
import jax
import jax.numpy as jnp
from jax import lax
from jax.experimental import pallas as pl
from jax.experimental.pallas import tpu as pltpu

# ---- problem sizes ----
N_NODES = 32      # nodes per instance
N_FEAT = 16       # features per node
ENC_HID = 32      # encoder hidden
EMB_DIM = 32      # encoder output / pooled embedding dim
N_HEADS = 4       # attention-pooling heads
HEAD_DIM = EMB_DIM // N_HEADS
CLS_HID = 32      # classifier hidden
N_CLASSES = 3
N_GRAPHS = 2      # graphs per instance
BATCH = 8         # independent graph-batch instances

TILE_B = 4                               # instances per grid step -> 128 rows/step
NR = TILE_B * N_NODES                    # 128 rows per step
GH_TOT = TILE_B * N_GRAPHS * N_HEADS     # 32 pooling columns per step
NG_TILE = TILE_B * N_GRAPHS              # 8 (instance, graph) outputs per step

EG_DIM = EMB_DIM + N_HEADS               # 36: fused [emb | gate] width
LOGIT_PAD = 32                           # classifier output padded to 32 lanes

# combined node-input layout: [ x(16) | ones(1) | pad | mask_exp(32) ]
XAUG_COLS = 64
ONES_LANE = N_FEAT                       # lane 16
MASK_OFF = 32

# ---- parameter/constant slab layout (one f32 slab => one DMA for everything) ----
ROW_W1B = 0     # (N_FEAT+1, ENC_HID), last row = b1 (bias folded via the ones lane)
ROW_W2G = 24    # (ENC_HID, EG_DIM)   encoder layer 2 with gate projection folded in
ROW_WC1 = 56    # (EMB_DIM, CLS_HID)
ROW_WC2 = 88    # (CLS_HID, LOGIT_PAD), columns >= N_CLASSES are zero
ROW_B2G = 120
ROW_BC1 = 121
ROW_BC2 = 122
ROW_TT = 128    # (N_HEADS, GH_TOT)    head-tiling selection
ROW_HM = 136    # (GH_TOT, EMB_DIM)    head block-diagonal selection
ROW_KREP = 168  # (NG_TILE, GH_TOT)    per-(instance, graph) head-sum
SLAB_ROWS = 176
SLAB_COLS = 64


def lolcat_kernel(xa_ref, slab_ref, out_ref):
    xa = xa_ref[...]                                   # (NR, 64) single input load
    xin = xa[:, :N_FEAT + 1]                           # (NR, 17)  x with ones column
    mask_exp = xa[:, MASK_OFF:MASK_OFF + GH_TOT]       # (NR, GH_TOT) membership mask

    # static views of the VMEM-resident parameter slab
    w1b = slab_ref[ROW_W1B:ROW_W1B + N_FEAT + 1, :ENC_HID]
    w2g = slab_ref[ROW_W2G:ROW_W2G + ENC_HID, :EG_DIM]
    b2g = slab_ref[ROW_B2G:ROW_B2G + 1, :EG_DIM]
    wc1 = slab_ref[ROW_WC1:ROW_WC1 + EMB_DIM, :CLS_HID]
    bc1 = slab_ref[ROW_BC1:ROW_BC1 + 1, :CLS_HID]
    wc2 = slab_ref[ROW_WC2:ROW_WC2 + CLS_HID, :LOGIT_PAD]
    bc2 = slab_ref[ROW_BC2:ROW_BC2 + 1, :LOGIT_PAD]
    t_tile = slab_ref[ROW_TT:ROW_TT + N_HEADS, :GH_TOT]
    hm = slab_ref[ROW_HM:ROW_HM + GH_TOT, :EMB_DIM]
    k_rep = slab_ref[ROW_KREP:ROW_KREP + NG_TILE, :GH_TOT]

    # ---------------- encoder MLP (b1 folded via ones lane, gate proj folded into layer 2) ----
    h = jnp.maximum(jnp.dot(xin, w1b, preferred_element_type=jnp.float32), 0.0)   # (NR, EH)
    eg = jnp.dot(h, w2g, preferred_element_type=jnp.float32) + b2g                 # (NR, D+NH)
    emb = eg[:, :EMB_DIM]                                                          # (NR, D)
    gate = eg[:, EMB_DIM:EG_DIM]                                                   # (NR, NH)

    # ---------------- multi-head global-attention pooling over (instance, graph, head) cols ---
    gate_t = jnp.dot(gate, t_tile, preferred_element_type=jnp.float32)             # (NR, GH_TOT)
    neg_inf = jnp.float32(-1e30)
    masked = jnp.where(mask_exp > 0.0, gate_t, neg_inf)
    mx = jnp.max(masked, axis=0, keepdims=True)                                    # (1, GH_TOT)
    e = jnp.exp(masked - mx) * mask_exp
    denom = jnp.sum(e, axis=0, keepdims=True) + 1e-12
    score = e * pl.reciprocal(denom, approx=True)                                  # EUP vrcp

    # node reduction on the MXU: p[c, :] = sum_n score[n, c] * emb[n, :]
    p = lax.dot_general(score, emb, dimension_numbers=(((0,), (0,)), ((), ())),
                        preferred_element_type=jnp.float32)                        # (GH_TOT, D)
    gemb = jnp.dot(k_rep, p * hm, preferred_element_type=jnp.float32)              # (NG_TILE, D)

    # ---------------- classifier MLP (logits padded to 32 lanes for one dense store) ----------
    hc = jnp.maximum(jnp.dot(gemb, wc1, preferred_element_type=jnp.float32) + bc1, 0.0)
    logits = jnp.dot(hc, wc2, preferred_element_type=jnp.float32) + bc2            # (NG_TILE, 32)

    out_ref[...] = jnp.concatenate([gemb, logits], axis=1)                         # (NG_TILE, 64)


def pack_params(params):
    """Fold the gate projection into the encoder, pad the classifier output to 32 lanes,
    and pack all weights + selection constants into one f32 slab."""
    w2g = jnp.concatenate([params["w2"], params["w2"] @ params["wg"]], axis=1)           # (EH, D+NH)
    b2g = jnp.concatenate([params["b2"], params["b2"] @ params["wg"] + params["bg"]], axis=1)

    col = jnp.arange(GH_TOT)
    t_tile = (col[None, :] % N_HEADS == jnp.arange(N_HEADS)[:, None]).astype(jnp.float32)
    hm = (jnp.arange(EMB_DIM)[None, :] // HEAD_DIM
          == (col % N_HEADS)[:, None]).astype(jnp.float32)
    k_rep = (col[None, :] // N_HEADS == jnp.arange(NG_TILE)[:, None]).astype(jnp.float32)

    slab = jnp.zeros((SLAB_ROWS, SLAB_COLS), jnp.float32)
    slab = slab.at[ROW_W1B:ROW_W1B + N_FEAT, :ENC_HID].set(params["w1"])
    slab = slab.at[ROW_W1B + N_FEAT, :ENC_HID].set(params["b1"][0])
    slab = slab.at[ROW_W2G:ROW_W2G + ENC_HID, :EG_DIM].set(w2g)
    slab = slab.at[ROW_B2G, :EG_DIM].set(b2g[0])
    slab = slab.at[ROW_WC1:ROW_WC1 + EMB_DIM, :CLS_HID].set(params["wc1"])
    slab = slab.at[ROW_BC1, :CLS_HID].set(params["bc1"][0])
    slab = slab.at[ROW_WC2:ROW_WC2 + CLS_HID, :N_CLASSES].set(params["wc2"])
    slab = slab.at[ROW_BC2, :N_CLASSES].set(params["bc2"][0])
    slab = slab.at[ROW_TT:ROW_TT + N_HEADS, :GH_TOT].set(t_tile)
    slab = slab.at[ROW_HM:ROW_HM + GH_TOT, :EMB_DIM].set(hm)
    slab = slab.at[ROW_KREP:ROW_KREP + NG_TILE, :GH_TOT].set(k_rep)
    return slab


def lolcat_forward(x, batch, params):
    """x: (B, N, F) float32, batch: (B, N) int32 graph ids in [0, N_GRAPHS)."""
    B = x.shape[0]
    assert B % TILE_B == 0
    slab = pack_params(params)

    # fold batch into rows; precompute the (row x pooling-column) membership mask
    col = jnp.arange(GH_TOT)
    col_inst = col // (N_GRAPHS * N_HEADS)
    col_graph = (col // N_HEADS) % N_GRAPHS
    b_local = jnp.arange(B) % TILE_B
    inst_match = b_local[:, None, None] == col_inst[None, None, :]          # (B, 1, GH_TOT)
    graph_match = batch[:, :, None] == col_graph[None, None, :]             # (B, N, GH_TOT)
    mask_exp = (inst_match & graph_match).astype(jnp.float32).reshape(B * N_NODES, GH_TOT)

    xa = jnp.zeros((B * N_NODES, XAUG_COLS), jnp.float32)
    xa = xa.at[:, :N_FEAT].set(x.reshape(B * N_NODES, N_FEAT))
    xa = xa.at[:, ONES_LANE].set(1.0)
    xa = xa.at[:, MASK_OFF:MASK_OFF + GH_TOT].set(mask_exp)

    out = pl.pallas_call(
        lolcat_kernel,
        out_shape=jax.ShapeDtypeStruct((B * N_GRAPHS, XAUG_COLS), jnp.float32),
        grid=(B // TILE_B,),
        in_specs=[
            pl.BlockSpec((NR, XAUG_COLS), lambda s: (s, 0)),        # one input DMA / step
            pl.BlockSpec((SLAB_ROWS, SLAB_COLS), lambda s: (0, 0)),  # VMEM-resident params
        ],
        out_specs=pl.BlockSpec((NG_TILE, XAUG_COLS), lambda s: (s, 0)),
        compiler_params=pltpu.CompilerParams(dimension_semantics=("parallel",)),
    )(xa, slab)

    gemb = out[:, :EMB_DIM].reshape(B, N_GRAPHS, EMB_DIM)
    logits = out[:, EMB_DIM:EMB_DIM + N_CLASSES].reshape(B, N_GRAPHS, N_CLASSES)
    # TODO(synk): return_attention=True path (per-node attention scores / gate values) is
    # computed in-kernel but not returned.
    return logits, {"global_emb": gemb}


def reference_forward_single(x, batch, params):
    """Pure-JAX reference for one instance (mirrors the PyTorch module with unfused weights)."""
    h = jax.nn.relu(x @ params["w1"] + params["b1"])
    emb = h @ params["w2"] + params["b2"]                              # (N, D)
    gate = emb @ params["wg"] + params["bg"]                           # (N, NH)
    mask = jax.nn.one_hot(batch, N_GRAPHS, dtype=jnp.float32)          # (N, G)
    masked = jnp.where(mask.T[:, :, None] > 0, gate[None, :, :], -1e30)   # (G, N, NH)
    mx = jnp.max(masked, axis=1, keepdims=True)
    e = jnp.exp(masked - mx) * mask.T[:, :, None]
    score = e / (jnp.sum(e, axis=1, keepdims=True) + 1e-12)            # (G, N, NH)
    emb_heads = emb.reshape(N_NODES, N_HEADS, HEAD_DIM)
    gemb = jnp.einsum("gnh,nhd->ghd", score, emb_heads).reshape(N_GRAPHS, EMB_DIM)
    logits = jax.nn.relu(gemb @ params["wc1"] + params["bc1"]) @ params["wc2"] + params["bc2"]
    return logits, gemb


def init_params(key):
    ks = jax.random.split(key, 6)
    scale = 0.1
    return {
        "w1": scale * jax.random.normal(ks[0], (N_FEAT, ENC_HID), jnp.float32),
        "b1": jnp.zeros((1, ENC_HID), jnp.float32),
        "w2": scale * jax.random.normal(ks[1], (ENC_HID, EMB_DIM), jnp.float32),
        "b2": jnp.zeros((1, EMB_DIM), jnp.float32),
        "wg": scale * jax.random.normal(ks[2], (EMB_DIM, N_HEADS), jnp.float32),
        "bg": jnp.zeros((1, N_HEADS), jnp.float32),
        "wc1": scale * jax.random.normal(ks[3], (EMB_DIM, CLS_HID), jnp.float32),
        "bc1": jnp.zeros((1, CLS_HID), jnp.float32),
        "wc2": scale * jax.random.normal(ks[4], (CLS_HID, N_CLASSES), jnp.float32),
        "bc2": jnp.zeros((1, N_CLASSES), jnp.float32),
    }


if __name__ == "__main__":
    key = jax.random.PRNGKey(0)
    kx, kp = jax.random.split(key)
    x = jax.random.normal(kx, (BATCH, N_NODES, N_FEAT), jnp.float32)
    # per-instance node->graph assignment: first counts[b] nodes in graph 0, rest in graph 1
    counts = jnp.array([20, 12, 16, 8, 24, 28, 4, 10], jnp.int32)[:BATCH]
    batch = (jnp.arange(N_NODES)[None, :] >= counts[:, None]).astype(jnp.int32)   # (B, N)
    params = init_params(kp)

    logits, aux = lolcat_forward(x, batch, params)
    logits = jax.block_until_ready(logits)
    gemb = jax.block_until_ready(aux["global_emb"])

    for b in range(BATCH):
        ref_logits, ref_gemb = reference_forward_single(x[b], batch[b], params)
        assert jnp.allclose(logits[b], ref_logits, atol=1e-3, rtol=1e-3), f"logits mismatch b={b}"
        assert jnp.allclose(gemb[b], ref_gemb, atol=1e-3, rtol=1e-3), f"gemb mismatch b={b}"

    print("KERNEL_OK")
</pallas_src>

<mosaic_0001>
module attributes {stable_mosaic.version = 11 : i64} {
  func.func @lolcat_kernel(%arg0: i32, %arg1: memref<128x64xf32, #tpu.memory_space<vmem>>, %arg2: memref<176x64xf32, #tpu.memory_space<vmem>>, %arg3: memref<8x64xf32, #tpu.memory_space<vmem>>) attributes {dimension_semantics = [#tpu.dimension_semantics<parallel>], iteration_bounds = array<i64: 2>, scalar_prefetch = 0 : i64, scratch_operands = 0 : i64, tpu.core_type = #tpu.core_type<tc>, window_params = [{transform_indices = @transform_0, window_bounds = array<i64: 128, 64>}, {pipeline_mode = #tpu.pipeline_mode<synchronous>, transform_indices = @transform_1, window_bounds = array<i64: 176, 64>}, {transform_indices = @transform_2, window_bounds = array<i64: 8, 64>}]} {
    %c0 = arith.constant 0 : index
    %c0_0 = arith.constant 0 : index
    %0 = vector.load %arg1[%c0, %c0_0] : memref<128x64xf32, #tpu.memory_space<vmem>>, vector<128x64xf32>
    %1 = vector.extract_strided_slice %0 {offsets = [0, 0], sizes = [128, 17], strides = [1, 1]} : vector<128x64xf32> to vector<128x17xf32>
    %2 = vector.extract_strided_slice %0 {offsets = [0, 32], sizes = [128, 32], strides = [1, 1]} : vector<128x64xf32> to vector<128x32xf32>
    %c0_1 = arith.constant 0 : index
    %c0_2 = arith.constant 0 : index
    %3 = vector.load %arg2[%c0_1, %c0_2] : memref<176x64xf32, #tpu.memory_space<vmem>>, vector<17x32xf32>
    %c24 = arith.constant 24 : index
    %c0_3 = arith.constant 0 : index
    %4 = vector.load %arg2[%c24, %c0_3] : memref<176x64xf32, #tpu.memory_space<vmem>>, vector<32x36xf32>
    %c120 = arith.constant 120 : index
    %c0_4 = arith.constant 0 : index
    %5 = vector.load %arg2[%c120, %c0_4] : memref<176x64xf32, #tpu.memory_space<vmem>>, vector<1x36xf32>
    %c56 = arith.constant 56 : index
    %c0_5 = arith.constant 0 : index
    %6 = vector.load %arg2[%c56, %c0_5] : memref<176x64xf32, #tpu.memory_space<vmem>>, vector<32x32xf32>
    %c121 = arith.constant 121 : index
    %c0_6 = arith.constant 0 : index
    %7 = vector.load %arg2[%c121, %c0_6] : memref<176x64xf32, #tpu.memory_space<vmem>>, vector<1x32xf32>
    %c88 = arith.constant 88 : index
    %c0_7 = arith.constant 0 : index
    %8 = vector.load %arg2[%c88, %c0_7] : memref<176x64xf32, #tpu.memory_space<vmem>>, vector<32x32xf32>
    %c122 = arith.constant 122 : index
    %c0_8 = arith.constant 0 : index
    %9 = vector.load %arg2[%c122, %c0_8] : memref<176x64xf32, #tpu.memory_space<vmem>>, vector<1x32xf32>
    %c128 = arith.constant 128 : index
    %c0_9 = arith.constant 0 : index
    %10 = vector.load %arg2[%c128, %c0_9] : memref<176x64xf32, #tpu.memory_space<vmem>>, vector<4x32xf32>
    %c136 = arith.constant 136 : index
    %c0_10 = arith.constant 0 : index
    %11 = vector.load %arg2[%c136, %c0_10] : memref<176x64xf32, #tpu.memory_space<vmem>>, vector<32x32xf32>
    %c168 = arith.constant 168 : index
    %c0_11 = arith.constant 0 : index
    %12 = vector.load %arg2[%c168, %c0_11] : memref<176x64xf32, #tpu.memory_space<vmem>>, vector<8x32xf32>
    %cst = arith.constant dense<0.000000e+00> : vector<128x32xf32>
    %13 = tpu.matmul %1, %3, %cst {dimension_numbers = #tpu.dot_dimension_numbers<[1], [0], [0], [1], [0, 0, 1, 1], [], []>} : vector<128x17xf32>, vector<17x32xf32>, vector<128x32xf32> -> vector<128x32xf32>
    %cst_12 = arith.constant 0.000000e+00 : f32
    %14 = vector.broadcast %cst_12 : f32 to vector<128x32xf32>
    %15 = arith.maximumf %13, %14 : vector<128x32xf32>
    %cst_13 = arith.constant dense<0.000000e+00> : vector<128x36xf32>
    %16 = tpu.matmul %15, %4, %cst_13 {dimension_numbers = #tpu.dot_dimension_numbers<[1], [0], [0], [1], [0, 0, 1, 1], [], []>} : vector<128x32xf32>, vector<32x36xf32>, vector<128x36xf32> -> vector<128x36xf32>
    %17 = vector.broadcast %5 : vector<1x36xf32> to vector<128x36xf32>
    %18 = arith.addf %16, %17 : vector<128x36xf32>
    %19 = vector.extract_strided_slice %18 {offsets = [0, 0], sizes = [128, 32], strides = [1, 1]} : vector<128x36xf32> to vector<128x32xf32>
    %20 = vector.extract_strided_slice %18 {offsets = [0, 32], sizes = [128, 4], strides = [1, 1]} : vector<128x36xf32> to vector<128x4xf32>
    %cst_14 = arith.constant dense<0.000000e+00> : vector<128x32xf32>
    %21 = tpu.matmul %20, %10, %cst_14 {dimension_numbers = #tpu.dot_dimension_numbers<[1], [0], [0], [1], [0, 0, 1, 1], [], []>} : vector<128x4xf32>, vector<4x32xf32>, vector<128x32xf32> -> vector<128x32xf32>
    %cst_15 = arith.constant 0.000000e+00 : f32
    %22 = vector.broadcast %cst_15 : f32 to vector<128x32xf32>
    %23 = arith.cmpf ogt, %2, %22 : vector<128x32xf32>
    %cst_16 = arith.constant -1.000000e+30 : f32
    %24 = vector.broadcast %cst_16 : f32 to vector<128x32xf32>
    %25 = arith.select %23, %21, %24 : vector<128x32xi1>, vector<128x32xf32>
    %cst_17 = arith.constant dense<0xFF800000> : vector<32xf32>
    %26 = vector.multi_reduction <maximumf>, %25, %cst_17 [0] : vector<128x32xf32> to vector<32xf32>
    %27 = vector.shape_cast %26 : vector<32xf32> to vector<1x32xf32>
    %28 = vector.broadcast %27 : vector<1x32xf32> to vector<128x32xf32>
    %29 = arith.subf %25, %28 : vector<128x32xf32>
    %30 = math.exp %29 : vector<128x32xf32>
    %31 = arith.mulf %30, %2 : vector<128x32xf32>
    %cst_18 = arith.constant dense<0.000000e+00> : vector<32xf32>
    %32 = vector.multi_reduction <add>, %31, %cst_18 [0] : vector<128x32xf32> to vector<32xf32>
    %33 = vector.shape_cast %32 : vector<32xf32> to vector<1x32xf32>
    %cst_19 = arith.constant 9.99999996E-13 : f32
    %34 = vector.broadcast %cst_19 : f32 to vector<1x32xf32>
    %35 = arith.addf %33, %34 : vector<1x32xf32>
    %36 = tpu.reciprocal %35 {approx = true} : vector<1x32xf32> -> vector<1x32xf32>
    %37 = vector.broadcast %36 : vector<1x32xf32> to vector<128x32xf32>
    %38 = arith.mulf %31, %37 : vector<128x32xf32>
    %cst_20 = arith.constant dense<0.000000e+00> : vector<32x32xf32>
    %39 = tpu.matmul %38, %19, %cst_20 {dimension_numbers = #tpu.dot_dimension_numbers<[0], [0], [1], [1], [0, 1, 1, 1], [], []>} : vector<128x32xf32>, vector<128x32xf32>, vector<32x32xf32> -> vector<32x32xf32>
    %40 = arith.mulf %39, %11 : vector<32x32xf32>
    %cst_21 = arith.constant dense<0.000000e+00> : vector<8x32xf32>
    %41 = tpu.matmul %12, %40, %cst_21 {dimension_numbers = #tpu.dot_dimension_numbers<[1], [0], [0], [1], [0, 0, 1, 1], [], []>} : vector<8x32xf32>, vector<32x32xf32>, vector<8x32xf32> -> vector<8x32xf32>
    %cst_22 = arith.constant dense<0.000000e+00> : vector<8x32xf32>
    %42 = tpu.matmul %41, %6, %cst_22 {dimension_numbers = #tpu.dot_dimension_numbers<[1], [0], [0], [1], [0, 0, 1, 1], [], []>} : vector<8x32xf32>, vector<32x32xf32>, vector<8x32xf32> -> vector<8x32xf32>
    %43 = vector.broadcast %7 : vector<1x32xf32> to vector<8x32xf32>
    %44 = arith.addf %42, %43 : vector<8x32xf32>
    %cst_23 = arith.constant 0.000000e+00 : f32
    %45 = vector.broadcast %cst_23 : f32 to vector<8x32xf32>
    %46 = arith.maximumf %44, %45 : vector<8x32xf32>
    %cst_24 = arith.constant dense<0.000000e+00> : vector<8x32xf32>
    %47 = tpu.matmul %46, %8, %cst_24 {dimension_numbers = #tpu.dot_dimension_numbers<[1], [0], [0], [1], [0, 0, 1, 1], [], []>} : vector<8x32xf32>, vector<32x32xf32>, vector<8x32xf32> -> vector<8x32xf32>
    %48 = vector.broadcast %9 : vector<1x32xf32> to vector<8x32xf32>
    %49 = arith.addf %47, %48 : vector<8x32xf32>
    %50 = tpu.concatenate %41, %49 in 1 : vector<8x32xf32>, vector<8x32xf32> -> vector<8x64xf32>
    %c0_25 = arith.constant 0 : index
    %c0_26 = arith.constant 0 : index
    %51 = vector.load %arg3[%c0_25, %c0_26] : memref<8x64xf32, #tpu.memory_space<vmem>>, vector<8x64xf32>
    tpu.vector_store %arg3[%c0_25, %c0_26], %50 {strides = array<i32>} : memref<8x64xf32, #tpu.memory_space<vmem>>, vector<8x64xf32>,
    return
  }
  func.func @transform_0(%arg0: i32) -> (i32, i32) {
    %c0_i32 = arith.constant 0 : i32
    %c0_i32_0 = arith.constant 0 : i32
    return %arg0, %c0_i32 : i32, i32
  }
  func.func @transform_1(%arg0: i32) -> (i32, i32) {
    %c0_i32 = arith.constant 0 : i32
    %c0_i32_0 = arith.constant 0 : i32
    %c0_i32_1 = arith.constant 0 : i32
    return %c0_i32, %c0_i32_0 : i32, i32
  }
  func.func @transform_2(%arg0: i32) -> (i32, i32) {
    %c0_i32 = arith.constant 0 : i32
    %c0_i32_0 = arith.constant 0 : i32
    return %arg0, %c0_i32 : i32, i32
  }
}

</mosaic_0001>

<llo_original>
// kernel: tpu_custom_call.1
$region0: #{tpu_custom_call.1}
  #allocation0 [shape = 'u32[]', space=smem, size = 0x4, offset = 0x4, fixed_abs, tag = 'smem constant byte address 0x4 - core index']
  #allocation1 [shape = 'u32[144,128]{1,0:T(1,128)}', space=vmem, size = 0x12000, scoped, tag = 'internal scratch']
  %s0 = inlined_call_operand.vmem [shape: f32[256,64], index: 0, kind: input, shape index: {}]
  %s1 = inlined_call_operand.vmem [shape: f32[176,64], index: 1, kind: input, shape index: {}]
  %s2 = inlined_call_operand.hbm [shape: f32[16,64], index: 2, kind: output, shape index: {}]
  %s3 = sld [smem:[#allocation0]]
  $region41: #{tpu_custom_call.1} parent=0
    _
  %s5 = ssub.s32 1, %s3
  %s6 = scalar_select 0, %s5, %s3
  $region1: #{tpu_custom_call.1} parent=0
    #allocation2 [shape = 'u8[8192]{0}', space=vmem, size = 0x2000, scoped, tag = 'output window, operand 0']
    #allocation3 [shape = 's32[2]{0}', space=sflag, size = 0x8, scoped, tag = 'scoped memory for tpu_custom_call.1']
    %7 = vsyncpa [#allocation3], 0
    %s8 = scalar_lea.sflag [#allocation3], 1
    %9 = vsyncpa %s8, 0
    loop: start=0, step=1, limit=4
    $region2: #{tpu_custom_call.1} parent=1 // loop_pre_header
      _
    $region3: #{tpu_custom_call.1} parent=1 // loop_header
      %s11 = sphi 0, %s15
      %p12 = scmp.ge.s32.totalorder %s11, 4
      %s21 = sphi 0, %s23
      %s24 = sphi 0, %s21
      %s25 = sphi 0, %s24
      %s41 = sphi 0, %s25
      %s45 = sphi 0, %s45
      %s47 = sphi 0, %s45
      %s48 = sphi 0, %s47
      %s62 = sphi 0, %s48
      %s68 = sphi 0, %s70
      %s71 = sphi 0, %s68
      %s72 = sphi 0, %s71
      %s88 = sphi 0, %s72
    $region4: #{tpu_custom_call.1} parent=1 // loop_header_branch
      %14 = sbr.rel (%p12) target = $region8
    $region5: #{tpu_custom_call.1} parent=1 // loop_body
      %s16 = ssub.s32 %s11, 1
      %s17 = ssub.s32 %s11, 2
      %s18 = sadd.s32 %s11, 1
      %s19 = ssub.s32 %s11, %s18
      %p20 = scmp.eq.s32.totalorder %s19, 0
      %s22 = sadd.s32 %s21, 1
      %s23 = scalar_select %p20, %s21, %s22
      %p26 = pneg %p20
      %p27 = scmp.eq.s32.totalorder %s11, 1
      %p28 = por %p26, %p27
      %p29 = scmp.ne.s32.totalorder %s21, %s24
      %p30 = scmp.eq.s32.totalorder %s11, 0
      %p31 = por %p29, %p30
      %p32 = scmp.ne.s32.totalorder %s21, %s24
      %p33 = scmp.eq.s32.totalorder %s16, 1
      %p34 = por %p32, %p33
      %p35 = scmp.ne.s32.totalorder %s24, %s25
      %p36 = scmp.eq.s32.totalorder %s16, 0
      %p37 = por %p35, %p36
      %p38 = scmp.ne.s32.totalorder %s24, %s25
      %p39 = scmp.eq.s32.totalorder %s17, 1
      %p40 = por %p38, %p39
      %p42 = scmp.ne.s32.totalorder %s25, %s41
      %p43 = scmp.eq.s32.totalorder %s17, 0
      %p44 = por %p42, %p43
      %s46 = sadd.s32 %s45, 1
      %p49 = scmp.eq.s32.totalorder %s11, 1
      %p50 = scmp.ne.s32.totalorder %s45, %s47
      %p51 = scmp.eq.s32.totalorder %s11, 0
      %p52 = por %p50, %p51
      %p53 = scmp.ne.s32.totalorder %s45, %s47
      %p54 = scmp.eq.s32.totalorder %s16, 1
      %p55 = por %p53, %p54
      %p56 = scmp.ne.s32.totalorder %s47, %s48
      %p57 = scmp.eq.s32.totalorder %s16, 0
      %p58 = por %p56, %p57
      %p59 = scmp.ne.s32.totalorder %s47, %s48
      %p60 = scmp.eq.s32.totalorder %s17, 1
      %p61 = por %p59, %p60
      %p63 = scmp.ne.s32.totalorder %s48, %s62
      %p64 = scmp.eq.s32.totalorder %s17, 0
      %p65 = por %p63, %p64
      %s66 = ssub.s32 %s11, %s18
      %p67 = scmp.eq.s32.totalorder %s66, 0
      %s69 = sadd.s32 %s68, 1
      %s70 = scalar_select %p67, %s68, %s69
      %p73 = pneg %p67
      %p74 = scmp.eq.s32.totalorder %s11, 1
      %p75 = por %p73, %p74
      %p76 = scmp.ne.s32.totalorder %s68, %s71
      %p77 = scmp.eq.s32.totalorder %s11, 0
      %p78 = por %p76, %p77
      %p79 = scmp.ne.s32.totalorder %s68, %s71
      %p80 = scmp.eq.s32.totalorder %s16, 1
      %p81 = por %p79, %p80
      %p82 = scmp.ne.s32.totalorder %s71, %s72
      %p83 = scmp.eq.s32.totalorder %s16, 0
      %p84 = por %p82, %p83
      %p85 = scmp.ne.s32.totalorder %s71, %s72
      %p86 = scmp.eq.s32.totalorder %s17, 1
      %p87 = por %p85, %p86
      %p89 = scmp.ne.s32.totalorder %s72, %s88
      %p90 = scmp.eq.s32.totalorder %s17, 0
      %p91 = por %p89, %p90
      %p92 = scmp.le.s32.totalorder 1, %s11
      %p93 = scmp.lt.s32.totalorder %s11, 3
      %p94 = pnand %p92, %p93
      %p95 = pneg %p94
      // Predicated region
      $region9: #{tpu_custom_call.1} parent=5 // pred_check
        _
      $region10: #{tpu_custom_call.1} parent=5 // pred_check_branch
        %97 = sbr.rel (%p94) target = $region12
      $region11: #{tpu_custom_call.1} parent=5 // pred_region
        %s98 = ssub.s32 %s11, 1
        // Predicated region
        $region13: #{tpu_custom_call.1} parent=11 // pred_check
          %p99 = pneg %p58
        $region14: #{tpu_custom_call.1} parent=11 // pred_check_branch
          %101 = sbr.rel (%p99) target = $region16
        $region15: #{tpu_custom_call.1} parent=11 // pred_region
          _
        $region16: #{tpu_custom_call.1} parent=11 // pred_fallthru
          _
      $region12: #{tpu_custom_call.1} parent=5 // pred_fallthru
        _
      %p102 = scmp.lt.s32.totalorder %s11, 2
      // Predicated region
      $region17: #{tpu_custom_call.1} parent=5 // pred_check
        %p103 = pneg %p102
      $region18: #{tpu_custom_call.1} parent=5 // pred_check_branch
        %105 = sbr.rel (%p103) target = $region20
      $region19: #{tpu_custom_call.1} parent=5 // pred_region
        // Predicated region
        $region21: #{tpu_custom_call.1} parent=19 // pred_check
          %p106 = pneg %p31
        $region22: #{tpu_custom_call.1} parent=19 // pred_check_branch
          %108 = sbr.rel (%p106) target = $region24
        $region23: #{tpu_custom_call.1} parent=19 // pred_region
          %s109 = smul.u32 16, %s11
          %p110 = scmp.lt.s32.totalorder %s109, 31
          %s111 = scalar_select %p110, %s109, 31
          %s112 = smul.addr %s111, 8
          %s113 = scalar_lea.vmem %s0, %s112
          %s114 = smul.u32 16, %s11
        $region24: #{tpu_custom_call.1} parent=19 // pred_fallthru
          _
      $region20: #{tpu_custom_call.1} parent=5 // pred_fallthru
        _
      %p115 = scmp.le.s32.totalorder 1, %s11
      %p116 = scmp.lt.s32.totalorder %s11, 3
      %p117 = pnand %p115, %p116
      %p118 = pneg %p117
      // Predicated region
      $region25: #{tpu_custom_call.1} parent=5 // pred_check
        _
      $region26: #{tpu_custom_call.1} parent=5 // pred_check_branch
        %120 = sbr.rel (%p117) target = $region28
      $region27: #{tpu_custom_call.1} parent=5 // pred_region
        %s121 = ssub.s32 %s11, 1
        %s122 = smul.u32 16, %s16
        %p123 = scmp.lt.s32.totalorder %s122, 31
        %s124 = scalar_select %p123, %s122, 31
        %s125 = smul.addr %s124, 8
        %s126 = scalar_lea.vmem %s0, %s125
        %p127 = pneg %p37
        %p128 = pneg %p34
        %p129 = pneg %p58
        %p130 = pneg %p55
        %p131 = pneg %p84
        %p132 = pneg %p81
        %s133 = sand.u32 %s71, 1
        %s134 = scalar_lea.sflag [#allocation3], %s133
        %s135 = sand.u32 %s71, 1
        %s136 = smul.addr %s135, 8
        %s137 = scalar_lea.vmem [#allocation2], %s136
        %s138 = smul.u32 16, %s16
        %p139 = scmp.lt.s32.totalorder %s138, 31
        %s140 = scalar_select %p139, %s138, 31
        %s141 = smul.addr %s140, 8
        %s142 = scalar_lea.vmem %s0, %s141
        %s143 = smul.u32 16, %s16
        %v144 = vld [vmem:[%s142] sm:$0xff]
        %v145 = vld [vmem:[%s142 + $0x8] sm:$0xff]
        %v146 = vld [vmem:[%s142 + $0x10] sm:$0xff]
        %v147 = vld [vmem:[%s142 + $0x18] sm:$0xff]
        %v148 = vld [vmem:[%s142 + $0x20] sm:$0xff]
        %v149 = vld [vmem:[%s142 + $0x28] sm:$0xff]
        %v150 = vld [vmem:[%s142 + $0x30] sm:$0xff]
        %v151 = vld [vmem:[%s142 + $0x38] sm:$0xff]
        %v152 = vld [vmem:[%s142 + $0x40] sm:$0xff]
        %v153 = vld [vmem:[%s142 + $0x48] sm:$0xff]
        %v154 = vld [vmem:[%s142 + $0x50] sm:$0xff]
        %v155 = vld [vmem:[%s142 + $0x58] sm:$0xff]
        %v156 = vld [vmem:[%s142 + $0x60] sm:$0xff]
        %v157 = vld [vmem:[%s142 + $0x68] sm:$0xff]
        %v158 = vld [vmem:[%s142 + $0x70] sm:$0xff]
        %v159 = vld [vmem:[%s142 + $0x78] sm:$0xff]
        %v160 = vld [vmem:[%s1] sm:$0xff]
        %v161 = vld [vmem:[%s1 + $0x8] sm:$0xff]
        %v162 = vld [vmem:[%s1 + $0x10] sm:$0x1]
        %v163 = vld [vmem:[%s1 + $0x18] sm:$0xff]
        %v164 = vld [vmem:[%s1 + $0x20] sm:$0xff]
        %v165 = vld [vmem:[%s1 + $0x28] sm:$0xff]
        %v166 = vld [vmem:[%s1 + $0x30] sm:$0xff]
        %v167 = vld [vmem:[%s1 + $0x78] sm:$0x1]
        %v168 = vld [vmem:[%s1 + $0x38] sm:$0xff]
        %v169 = vld [vmem:[%s1 + $0x40] sm:$0xff]
        %v170 = vld [vmem:[%s1 + $0x48] sm:$0xff]
        %v171 = vld [vmem:[%s1 + $0x50] sm:$0xff]
        %v172 = vld [vmem:[%s1 + $0x79] sm:$0x1]
        %v173 = vld [vmem:[%s1 + $0x58] sm:$0xff]
        %v174 = vld [vmem:[%s1 + $0x60] sm:$0xff]
        %v175 = vld [vmem:[%s1 + $0x68] sm:$0xff]
        %v176 = vld [vmem:[%s1 + $0x70] sm:$0xff]
        %v177 = vld [vmem:[%s1 + $0x7a] sm:$0x1]
        %v178 = vld [vmem:[%s1 + $0x80] sm:$0xf]
        %v179 = vld [vmem:[%s1 + $0x88] sm:$0xff]
        %v180 = vld [vmem:[%s1 + $0x90] sm:$0xff]
        %v181 = vld [vmem:[%s1 + $0x98] sm:$0xff]
        %v182 = vld [vmem:[%s1 + $0xa0] sm:$0xff]
        %v183 = vld [vmem:[%s1 + $0xa8] sm:$0xff]
        %vm184 = vcmask 138240
        %v186 = vsel %vm184, %v144, 0
        %v189 = vsel %vm184, %v145, 0
        %v192 = vsel %vm184, %v146, 0
        %v195 = vsel %vm184, %v147, 0
        %v198 = vsel %vm184, %v148, 0
        %v201 = vsel %vm184, %v149, 0
        %v204 = vsel %vm184, %v150, 0
        %v207 = vsel %vm184, %v151, 0
        %v210 = vsel %vm184, %v152, 0
        %v213 = vsel %vm184, %v153, 0
        %v216 = vsel %vm184, %v154, 0
        %v219 = vsel %vm184, %v155, 0
        %v222 = vsel %vm184, %v156, 0
        %v225 = vsel %vm184, %v157, 0
        %v228 = vsel %vm184, %v158, 0
        %v231 = vsel %vm184, %v159, 0
        %vm233 = vcmask 1040384
        %v235 = vsel %vm233, %v162, 0
        %237 = vmatprep.subr.mxu0 0.0
        %238 = vmatpush1.msra.mxu0 %v160
        %239 = vmatprep.subr.mxu0 0.0
        %240 = vmatpush1.msra.mxu0 %v161
        %241 = vmatprep.subr.mxu0 0.0
        %242 = vmatpush1.msra.mxu0 %v235
        %243 = vmatprep.subr.mxu0 0.0
        %244 = vmatpush1.msra.mxu0 0.0
        %245 = vmatprep.subr.mxu0 0.0
        %246 = vmatpush1.msra.mxu0 0.0
        %247 = vmatprep.subr.mxu0 0.0
        %248 = vmatpush1.msra.mxu0 0.0
        %249 = vmatprep.subr.mxu0 0.0
        %250 = vmatpush1.msra.mxu0 0.0
        %251 = vmatprep.subr.mxu0 0.0
        %252 = vmatpush1.msra.mxu0 0.0
        %253 = vmatprep.subr.mxu0 0.0
        %254 = vmatpush1.msra.mxu0 0.0
        %255 = vmatprep.subr.mxu0 0.0
        %256 = vmatpush1.msra.mxu0 0.0
        %257 = vmatprep.subr.mxu0 0.0
        %258 = vmatpush1.msra.mxu0 0.0
        %259 = vmatprep.subr.mxu0 0.0
        %260 = vmatpush1.msra.mxu0 0.0
        %261 = vmatprep.subr.mxu0 0.0
        %262 = vmatpush1.msra.mxu0 0.0
        %263 = vmatprep.subr.mxu0 0.0
        %264 = vmatpush1.msra.mxu0 0.0
        %265 = vmatprep.subr.mxu0 0.0
        %266 = vmatpush1.msra.mxu0 0.0
        %267 = vmatprep.subr.mxu0 0.0
        %268 = vmatpush1.msra.mxu0 0.0
        %269 = vmatprep.subr.mxu0 0.0
        %270 = vmatpush1.msra.mxu0 0.0
        %271 = vmatprep.subr.mxu0 0.0
        %272 = vmatpush1.msra.mxu0 0.0
        %273 = vmatprep.subr.mxu0 0.0
        %274 = vmatpush1.msra.mxu0 0.0
        %275 = vmatprep.subr.mxu0 0.0
        %276 = vmatpush1.msra.mxu0 0.0
        %277 = vmatprep.subr.mxu0 0.0
        %278 = vmatpush1.msra.mxu0 0.0
        %279 = vmatprep.subr.mxu0 0.0
        %280 = vmatpush1.msra.mxu0 0.0
        %281 = vmatprep.subr.mxu0 0.0
        %282 = vmatpush1.msra.mxu0 0.0
        %283 = vmatprep.subr.mxu0 0.0
        %284 = vmatpush1.msra.mxu0 0.0
        %285 = vmatprep.subr.mxu0 0.0
        %286 = vmatpush1.msra.mxu0 0.0
        %287 = vmatprep.subr.mxu0 0.0
        %288 = vmatpush1.msra.mxu0 0.0
        %289 = vmatprep.subr.mxu0 0.0
        %290 = vmatpush1.msra.mxu0 0.0
        %291 = vmatprep.subr.mxu0 0.0
        %292 = vmatpush1.msra.mxu0 0.0
        %293 = vmatprep.subr.mxu0 0.0
        %294 = vmatpush1.msra.mxu0 0.0
        %295 = vmatprep.subr.mxu0 0.0
        %296 = vmatpush1.msra.mxu0 0.0
        %297 = vmatprep.subr.mxu0 0.0
        %298 = vmatpush1.msra.mxu0 0.0
        %299 = vmatprep.subr.mxu0 0.0
        %300 = vmatpush1.msra.mxu0 0.0
        %301 = vmatprep.mubr.f32.mxu0 0.0
        %302 = vmatmul.mubr.f32.gmra.mrb[0].mxu0 %v186
        %v303 = vpop.f32.mrb[0].mxu0
        %v304 = vadd.f32 0.0, %v303
        %v305 = vpop.f32.mrb[0].mxu0
        %306 = vmatprep.mubr.f32.mxu0 0.0
        %307 = vmatmul.mubr.f32.gmra.mrb[0].mxu0 %v189
        %v308 = vpop.f32.mrb[0].mxu0
        %v309 = vadd.f32 0.0, %v308
        %v310 = vpop.f32.mrb[0].mxu0
        %311 = vmatprep.mubr.f32.mxu0 0.0
        %312 = vmatmul.mubr.f32.gmra.mrb[0].mxu0 %v192
        %v313 = vpop.f32.mrb[0].mxu0
        %v314 = vadd.f32 0.0, %v313
        %v315 = vpop.f32.mrb[0].mxu0
        %316 = vmatprep.mubr.f32.mxu0 0.0
        %317 = vmatmul.mubr.f32.gmra.mrb[0].mxu0 %v195
        %v318 = vpop.f32.mrb[0].mxu0
        %v319 = vadd.f32 0.0, %v318
        %v320 = vpop.f32.mrb[0].mxu0
        %321 = vmatprep.mubr.f32.mxu0 0.0
        %322 = vmatmul.mubr.f32.gmra.mrb[0].mxu0 %v198
        %v323 = vpop.f32.mrb[0].mxu0
        %v324 = vadd.f32 0.0, %v323
        %v325 = vpop.f32.mrb[0].mxu0
        %326 = vmatprep.mubr.f32.mxu0 0.0
        %327 = vmatmul.mubr.f32.gmra.mrb[0].mxu0 %v201
        %v328 = vpop.f32.mrb[0].mxu0
        %v329 = vadd.f32 0.0, %v328
        %v330 = vpop.f32.mrb[0].mxu0
        %331 = vmatprep.mubr.f32.mxu0 0.0
        %332 = vmatmul.mubr.f32.gmra.mrb[0].mxu0 %v204
        %v333 = vpop.f32.mrb[0].mxu0
        %v334 = vadd.f32 0.0, %v333
        %v335 = vpop.f32.mrb[0].mxu0
        %336 = vmatprep.mubr.f32.mxu0 0.0
        %337 = vmatmul.mubr.f32.gmra.mrb[0].mxu0 %v207
        %v338 = vpop.f32.mrb[0].mxu0
        %v339 = vadd.f32 0.0, %v338
        %v340 = vpop.f32.mrb[0].mxu0
        %341 = vmatprep.mubr.f32.mxu0 0.0
        %342 = vmatmul.mubr.f32.gmra.mrb[0].mxu0 %v210
        %v343 = vpop.f32.mrb[0].mxu0
        %v344 = vadd.f32 0.0, %v343
        %v345 = vpop.f32.mrb[0].mxu0
        %346 = vmatprep.mubr.f32.mxu0 0.0
        %347 = vmatmul.mubr.f32.gmra.mrb[0].mxu0 %v213
        %v348 = vpop.f32.mrb[0].mxu0
        %v349 = vadd.f32 0.0, %v348
        %v350 = vpop.f32.mrb[0].mxu0
        %351 = vmatprep.mubr.f32.mxu0 0.0
        %352 = vmatmul.mubr.f32.gmra.mrb[0].mxu0 %v216
        %v353 = vpop.f32.mrb[0].mxu0
        %v354 = vadd.f32 0.0, %v353
        %v355 = vpop.f32.mrb[0].mxu0
        %356 = vmatprep.mubr.f32.mxu0 0.0
        %357 = vmatmul.mubr.f32.gmra.mrb[0].mxu0 %v219
        %v358 = vpop.f32.mrb[0].mxu0
        %v359 = vadd.f32 0.0, %v358
        %v360 = vpop.f32.mrb[0].mxu0
        %361 = vmatprep.mubr.f32.mxu0 0.0
        %362 = vmatmul.mubr.f32.gmra.mrb[0].mxu0 %v222
        %v363 = vpop.f32.mrb[0].mxu0
        %v364 = vadd.f32 0.0, %v363
        %v365 = vpop.f32.mrb[0].mxu0
        %366 = vmatprep.mubr.f32.mxu0 0.0
        %367 = vmatmul.mubr.f32.gmra.mrb[0].mxu0 %v225
        %v368 = vpop.f32.mrb[0].mxu0
        %v369 = vadd.f32 0.0, %v368
        %v370 = vpop.f32.mrb[0].mxu0
        %371 = vmatprep.mubr.f32.mxu0 0.0
        %372 = vmatmul.mubr.f32.gmra.mrb[0].mxu0 %v228
        %v373 = vpop.f32.mrb[0].mxu0
        %v374 = vadd.f32 0.0, %v373
        %v375 = vpop.f32.mrb[0].mxu0
        %376 = vmatprep.mubr.f32.mxu0 0.0
        %377 = vmatmul.mubr.f32.gmra.mrb[0].mxu0 %v231
        %v378 = vpop.f32.mrb[0].mxu0
        %v379 = vadd.f32 0.0, %v378
        %v380 = vpop.f32.mrb[0].mxu0
        %381 = vdwg.mxu0
        %v382 = vmax.f32 %v304, 0.0
        %v383 = vmax.f32 %v309, 0.0
        %v384 = vmax.f32 %v314, 0.0
        %v385 = vmax.f32 %v319, 0.0
        %v386 = vmax.f32 %v324, 0.0
        %v387 = vmax.f32 %v329, 0.0
        %v388 = vmax.f32 %v334, 0.0
        %v389 = vmax.f32 %v339, 0.0
        %v390 = vmax.f32 %v344, 0.0
        %v391 = vmax.f32 %v349, 0.0
        %v392 = vmax.f32 %v354, 0.0
        %v393 = vmax.f32 %v359, 0.0
        %v394 = vmax.f32 %v364, 0.0
        %v395 = vmax.f32 %v369, 0.0
        %v396 = vmax.f32 %v374, 0.0
        %v397 = vmax.f32 %v379, 0.0
        %v398 = vlaneseq
        %v399 = vshrl.u32 %v398, 7
        %v400 = vsub.s32 0, %v399
        %v401 = vrot.slane %v167, %v400
        %vm402 = vcmask 261120
        %v404 = vsel %vm402, %v382, 0
        %v407 = vsel %vm402, %v383, 0
        %v410 = vsel %vm402, %v384, 0
        %v413 = vsel %vm402, %v385, 0
        %v416 = vsel %vm402, %v386, 0
        %v419 = vsel %vm402, %v387, 0
        %v422 = vsel %vm402, %v388, 0
        %v425 = vsel %vm402, %v389, 0
        %v428 = vsel %vm402, %v390, 0
        %v431 = vsel %vm402, %v391, 0
        %v434 = vsel %vm402, %v392, 0
        %v437 = vsel %vm402, %v393, 0
        %v440 = vsel %vm402, %v394, 0
        %v443 = vsel %vm402, %v395, 0
        %v446 = vsel %vm402, %v396, 0
        %v449 = vsel %vm402, %v397, 0
        %451 = vmatprep.subr.mxu0 0.0
        %452 = vmatpush1.msra.mxu0 %v163
        %453 = vmatprep.subr.mxu0 0.0
        %454 = vmatpush1.msra.mxu0 %v164
        %455 = vmatprep.subr.mxu0 0.0
        %456 = vmatpush1.msra.mxu0 %v165
        %457 = vmatprep.subr.mxu0 0.0
        %458 = vmatpush1.msra.mxu0 %v166
        %459 = vmatprep.subr.mxu0 0.0
        %460 = vmatpush1.msra.mxu0 0.0
        %461 = vmatprep.subr.mxu0 0.0
        %462 = vmatpush1.msra.mxu0 0.0
        %463 = vmatprep.subr.mxu0 0.0
        %464 = vmatpush1.msra.mxu0 0.0
        %465 = vmatprep.subr.mxu0 0.0
        %466 = vmatpush1.msra.mxu0 0.0
        %467 = vmatprep.subr.mxu0 0.0
        %468 = vmatpush1.msra.mxu0 0.0
        %469 = vmatprep.subr.mxu0 0.0
        %470 = vmatpush1.msra.mxu0 0.0
        %471 = vmatprep.subr.mxu0 0.0
        %472 = vmatpush1.msra.mxu0 0.0
        %473 = vmatprep.subr.mxu0 0.0
        %474 = vmatpush1.msra.mxu0 0.0
        %475 = vmatprep.subr.mxu0 0.0
        %476 = vmatpush1.msra.mxu0 0.0
        %477 = vmatprep.subr.mxu0 0.0
        %478 = vmatpush1.msra.mxu0 0.0
        %479 = vmatprep.subr.mxu0 0.0
        %480 = vmatpush1.msra.mxu0 0.0
        %481 = vmatprep.subr.mxu0 0.0
        %482 = vmatpush1.msra.mxu0 0.0
        %483 = vmatprep.subr.mxu0 0.0
        %484 = vmatpush1.msra.mxu0 0.0
        %485 = vmatprep.subr.mxu0 0.0
        %486 = vmatpush1.msra.mxu0 0.0
        %487 = vmatprep.subr.mxu0 0.0
        %488 = vmatpush1.msra.mxu0 0.0
        %489 = vmatprep.subr.mxu0 0.0
        %490 = vmatpush1.msra.mxu0 0.0
        %491 = vmatprep.subr.mxu0 0.0
        %492 = vmatpush1.msra.mxu0 0.0
        %493 = vmatprep.subr.mxu0 0.0
        %494 = vmatpush1.msra.mxu0 0.0
        %495 = vmatprep.subr.mxu0 0.0
        %496 = vmatpush1.msra.mxu0 0.0
        %497 = vmatprep.subr.mxu0 0.0
        %498 = vmatpush1.msra.mxu0 0.0
        %499 = vmatprep.subr.mxu0 0.0
        %500 = vmatpush1.msra.mxu0 0.0
        %501 = vmatprep.subr.mxu0 0.0
        %502 = vmatpush1.msra.mxu0 0.0
        %503 = vmatprep.subr.mxu0 0.0
        %504 = vmatpush1.msra.mxu0 0.0
        %505 = vmatprep.subr.mxu0 0.0
        %506 = vmatpush1.msra.mxu0 0.0
        %507 = vmatprep.subr.mxu0 0.0
        %508 = vmatpush1.msra.mxu0 0.0
        %509 = vmatprep.subr.mxu0 0.0
        %510 = vmatpush1.msra.mxu0 0.0
        %511 = vmatprep.subr.mxu0 0.0
        %512 = vmatpush1.msra.mxu0 0.0
        %513 = vmatprep.subr.mxu0 0.0
        %514 = vmatpush1.msra.mxu0 0.0
        %515 = vmatprep.mubr.f32.mxu0 0.0
        %516 = vmatmul.mubr.f32.gmra.mrb[0].mxu0 %v404
        %v517 = vpop.f32.mrb[0].mxu0
        %v518 = vadd.f32 %v401, %v517
        %v519 = vpop.f32.mrb[0].mxu0
        %520 = vmatprep.mubr.f32.mxu0 0.0
        %521 = vmatmul.mubr.f32.gmra.mrb[0].mxu0 %v407
        %v522 = vpop.f32.mrb[0].mxu0
        %v523 = vadd.f32 %v401, %v522
        %v524 = vpop.f32.mrb[0].mxu0
        %525 = vmatprep.mubr.f32.mxu0 0.0
        %526 = vmatmul.mubr.f32.gmra.mrb[0].mxu0 %v410
        %v527 = vpop.f32.mrb[0].mxu0
        %v528 = vadd.f32 %v401, %v527
        %v529 = vpop.f32.mrb[0].mxu0
        %530 = vmatprep.mubr.f32.mxu0 0.0
        %531 = vmatmul.mubr.f32.gmra.mrb[0].mxu0 %v413
        %v532 = vpop.f32.mrb[0].mxu0
        %v533 = vadd.f32 %v401, %v532
        %v534 = vpop.f32.mrb[0].mxu0
        %535 = vmatprep.mubr.f32.mxu0 0.0
        %536 = vmatmul.mubr.f32.gmra.mrb[0].mxu0 %v416
        %v537 = vpop.f32.mrb[0].mxu0
        %v538 = vadd.f32 %v401, %v537
        %v539 = vpop.f32.mrb[0].mxu0
        %540 = vmatprep.mubr.f32.mxu0 0.0
        %541 = vmatmul.mubr.f32.gmra.mrb[0].mxu0 %v419
        %v542 = vpop.f32.mrb[0].mxu0
        %v543 = vadd.f32 %v401, %v542
        %v544 = vpop.f32.mrb[0].mxu0
        %545 = vmatprep.mubr.f32.mxu0 0.0
        %546 = vmatmul.mubr.f32.gmra.mrb[0].mxu0 %v422
        %v547 = vpop.f32.mrb[0].mxu0
        %v548 = vadd.f32 %v401, %v547
        %v549 = vpop.f32.mrb[0].mxu0
        %550 = vmatprep.mubr.f32.mxu0 0.0
        %551 = vmatmul.mubr.f32.gmra.mrb[0].mxu0 %v425
        %v552 = vpop.f32.mrb[0].mxu0
        %v553 = vadd.f32 %v401, %v552
        %v554 = vpop.f32.mrb[0].mxu0
        %555 = vmatprep.mubr.f32.mxu0 0.0
        %556 = vmatmul.mubr.f32.gmra.mrb[0].mxu0 %v428
        %v557 = vpop.f32.mrb[0].mxu0
        %v558 = vadd.f32 %v401, %v557
        %v559 = vpop.f32.mrb[0].mxu0
        %560 = vmatprep.mubr.f32.mxu0 0.0
        %561 = vmatmul.mubr.f32.gmra.mrb[0].mxu0 %v431
        %v562 = vpop.f32.mrb[0].mxu0
        %v563 = vadd.f32 %v401, %v562
        %v564 = vpop.f32.mrb[0].mxu0
        %565 = vmatprep.mubr.f32.mxu0 0.0
        %566 = vmatmul.mubr.f32.gmra.mrb[0].mxu0 %v434
        %v567 = vpop.f32.mrb[0].mxu0
        %v568 = vadd.f32 %v401, %v567
        %v569 = vpop.f32.mrb[0].mxu0
        %570 = vmatprep.mubr.f32.mxu0 0.0
        %571 = vmatmul.mubr.f32.gmra.mrb[0].mxu0 %v437
        %v572 = vpop.f32.mrb[0].mxu0
        %v573 = vadd.f32 %v401, %v572
        %v574 = vpop.f32.mrb[0].mxu0
        %575 = vmatprep.mubr.f32.mxu0 0.0
        %576 = vmatmul.mubr.f32.gmra.mrb[0].mxu0 %v440
        %v577 = vpop.f32.mrb[0].mxu0
        %v578 = vadd.f32 %v401, %v577
        %v579 = vpop.f32.mrb[0].mxu0
        %580 = vmatprep.mubr.f32.mxu0 0.0
        %581 = vmatmul.mubr.f32.gmra.mrb[0].mxu0 %v443
        %v582 = vpop.f32.mrb[0].mxu0
        %v583 = vadd.f32 %v401, %v582
        %v584 = vpop.f32.mrb[0].mxu0
        %585 = vmatprep.mubr.f32.mxu0 0.0
        %586 = vmatmul.mubr.f32.gmra.mrb[0].mxu0 %v446
        %v587 = vpop.f32.mrb[0].mxu0
        %v588 = vadd.f32 %v401, %v587
        %v589 = vpop.f32.mrb[0].mxu0
        %590 = vmatprep.mubr.f32.mxu0 0.0
        %591 = vmatmul.mubr.f32.gmra.mrb[0].mxu0 %v449
        %v592 = vpop.f32.mrb[0].mxu0
        %v593 = vadd.f32 %v401, %v592
        %v594 = vpop.f32.mrb[0].mxu0
        %595 = vdwg.mxu0
        %612 = vrot.lane.b32.xlu0 %v518, 96
        %v613 = vpop.permute.xlu0 %612
        %614 = vrot.lane.b32.xlu0 %v523, 96
        %v615 = vpop.permute.xlu0 %614
        %616 = vrot.lane.b32.xlu0 %v528, 96
        %v617 = vpop.permute.xlu0 %616
        %618 = vrot.lane.b32.xlu0 %v533, 96
        %v619 = vpop.permute.xlu0 %618
        %620 = vrot.lane.b32.xlu0 %v538, 96
        %v621 = vpop.permute.xlu0 %620
        %622 = vrot.lane.b32.xlu0 %v543, 96
        %v623 = vpop.permute.xlu0 %622
        %624 = vrot.lane.b32.xlu0 %v548, 96
        %v625 = vpop.permute.xlu0 %624
        %626 = vrot.lane.b32.xlu0 %v553, 96
        %v627 = vpop.permute.xlu0 %626
        %628 = vrot.lane.b32.xlu0 %v558, 96
        %v629 = vpop.permute.xlu0 %628
        %630 = vrot.lane.b32.xlu0 %v563, 96
        %v631 = vpop.permute.xlu0 %630
        %632 = vrot.lane.b32.xlu0 %v568, 96
        %v633 = vpop.permute.xlu0 %632
        %634 = vrot.lane.b32.xlu0 %v573, 96
        %v635 = vpop.permute.xlu0 %634
        %636 = vrot.lane.b32.xlu0 %v578, 96
        %v637 = vpop.permute.xlu0 %636
        %638 = vrot.lane.b32.xlu0 %v583, 96
        %v639 = vpop.permute.xlu0 %638
        %640 = vrot.lane.b32.xlu0 %v588, 96
        %v641 = vpop.permute.xlu0 %640
        %642 = vrot.lane.b32.xlu0 %v593, 96
        %v643 = vpop.permute.xlu0 %642
        %vm644 = vcmask 31744
        %v645 = vsel %vm644, %v613, 0
        %v647 = vsel %vm644, %v615, 0
        %v649 = vsel %vm644, %v617, 0
        %v651 = vsel %vm644, %v619, 0
        %v653 = vsel %vm644, %v621, 0
        %v655 = vsel %vm644, %v623, 0
        %v657 = vsel %vm644, %v625, 0
        %v659 = vsel %vm644, %v627, 0
        %v661 = vsel %vm644, %v629, 0
        %v663 = vsel %vm644, %v631, 0
        %v665 = vsel %vm644, %v633, 0
        %v667 = vsel %vm644, %v635, 0
        %v669 = vsel %vm644, %v637, 0
        %v671 = vsel %vm644, %v639, 0
        %v673 = vsel %vm644, %v641, 0
        %v675 = vsel %vm644, %v643, 0
        %vm677 = vcmask 1043456
        %v679 = vsel %vm677, %v178, 0
        %681 = vmatprep.subr.mxu0 0.0
        %682 = vmatpush1.msra.mxu0 %v679
        %683 = vmatprep.subr.mxu0 0.0
        %684 = vmatpush1.msra.mxu0 0.0
        %685 = vmatprep.subr.mxu0 0.0
        %686 = vmatpush1.msra.mxu0 0.0
        %687 = vmatprep.subr.mxu0 0.0
        %688 = vmatpush1.msra.mxu0 0.0
        %689 = vmatprep.subr.mxu0 0.0
        %690 = vmatpush1.msra.mxu0 0.0
        %691 = vmatprep.subr.mxu0 0.0
        %692 = vmatpush1.msra.mxu0 0.0
        %693 = vmatprep.subr.mxu0 0.0
        %694 = vmatpush1.msra.mxu0 0.0
        %695 = vmatprep.subr.mxu0 0.0
        %696 = vmatpush1.msra.mxu0 0.0
        %697 = vmatprep.subr.mxu0 0.0
        %698 = vmatpush1.msra.mxu0 0.0
        %699 = vmatprep.subr.mxu0 0.0
        %700 = vmatpush1.msra.mxu0 0.0
        %701 = vmatprep.subr.mxu0 0.0
        %702 = vmatpush1.msra.mxu0 0.0
        %703 = vmatprep.subr.mxu0 0.0
        %704 = vmatpush1.msra.mxu0 0.0
        %705 = vmatprep.subr.mxu0 0.0
        %706 = vmatpush1.msra.mxu0 0.0
        %707 = vmatprep.subr.mxu0 0.0
        %708 = vmatpush1.msra.mxu0 0.0
        %709 = vmatprep.subr.mxu0 0.0
        %710 = vmatpush1.msra.mxu0 0.0
        %711 = vmatprep.subr.mxu0 0.0
        %712 = vmatpush1.msra.mxu0 0.0
        %713 = vmatprep.subr.mxu0 0.0
        %714 = vmatpush1.msra.mxu0 0.0
        %715 = vmatprep.subr.mxu0 0.0
        %716 = vmatpush1.msra.mxu0 0.0
        %717 = vmatprep.subr.mxu0 0.0
        %718 = vmatpush1.msra.mxu0 0.0
        %719 = vmatprep.subr.mxu0 0.0
        %720 = vmatpush1.msra.mxu0 0.0
        %721 = vmatprep.subr.mxu0 0.0
        %722 = vmatpush1.msra.mxu0 0.0
        %723 = vmatprep.subr.mxu0 0.0
        %724 = vmatpush1.msra.mxu0 0.0
        %725 = vmatprep.subr.mxu0 0.0
        %726 = vmatpush1.msra.mxu0 0.0
        %727 = vmatprep.subr.mxu0 0.0
        %728 = vmatpush1.msra.mxu0 0.0
        %729 = vmatprep.subr.mxu0 0.0
        %730 = vmatpush1.msra.mxu0 0.0
        %731 = vmatprep.subr.mxu0 0.0
        %732 = vmatpush1.msra.mxu0 0.0
        %733 = vmatprep.subr.mxu0 0.0
        %734 = vmatpush1.msra.mxu0 0.0
        %735 = vmatprep.subr.mxu0 0.0
        %736 = vmatpush1.msra.mxu0 0.0
        %737 = vmatprep.subr.mxu0 0.0
        %738 = vmatpush1.msra.mxu0 0.0
        %739 = vmatprep.subr.mxu0 0.0
        %740 = vmatpush1.msra.mxu0 0.0
        %741 = vmatprep.subr.mxu0 0.0
        %742 = vmatpush1.msra.mxu0 0.0
        %743 = vmatprep.subr.mxu0 0.0
        %744 = vmatpush1.msra.mxu0 0.0
        %745 = vmatprep.mubr.f32.mxu0 0.0
        %746 = vmatmul.mubr.f32.gmra.mrb[0].mxu0 %v645
        %v747 = vpop.f32.mrb[0].mxu0
        %v748 = vadd.f32 0.0, %v747
        %v749 = vpop.f32.mrb[0].mxu0
        %750 = vmatprep.mubr.f32.mxu0 0.0
        %751 = vmatmul.mubr.f32.gmra.mrb[0].mxu0 %v647
        %v752 = vpop.f32.mrb[0].mxu0
        %v753 = vadd.f32 0.0, %v752
        %v754 = vpop.f32.mrb[0].mxu0
        %755 = vmatprep.mubr.f32.mxu0 0.0
        %756 = vmatmul.mubr.f32.gmra.mrb[0].mxu0 %v649
        %v757 = vpop.f32.mrb[0].mxu0
        %v758 = vadd.f32 0.0, %v757
        %v759 = vpop.f32.mrb[0].mxu0
        %760 = vmatprep.mubr.f32.mxu0 0.0
        %761 = vmatmul.mubr.f32.gmra.mrb[0].mxu0 %v651
        %v762 = vpop.f32.mrb[0].mxu0
        %v763 = vadd.f32 0.0, %v762
        %v764 = vpop.f32.mrb[0].mxu0
        %765 = vmatprep.mubr.f32.mxu0 0.0
        %766 = vmatmul.mubr.f32.gmra.mrb[0].mxu0 %v653
        %v767 = vpop.f32.mrb[0].mxu0
        %v768 = vadd.f32 0.0, %v767
        %v769 = vpop.f32.mrb[0].mxu0
        %770 = vmatprep.mubr.f32.mxu0 0.0
        %771 = vmatmul.mubr.f32.gmra.mrb[0].mxu0 %v655
        %v772 = vpop.f32.mrb[0].mxu0
        %v773 = vadd.f32 0.0, %v772
        %v774 = vpop.f32.mrb[0].mxu0
        %775 = vmatprep.mubr.f32.mxu0 0.0
        %776 = vmatmul.mubr.f32.gmra.mrb[0].mxu0 %v657
        %v777 = vpop.f32.mrb[0].mxu0
        %v778 = vadd.f32 0.0, %v777
        %v779 = vpop.f32.mrb[0].mxu0
        %780 = vmatprep.mubr.f32.mxu0 0.0
        %781 = vmatmul.mubr.f32.gmra.mrb[0].mxu0 %v659
        %v782 = vpop.f32.mrb[0].mxu0
        %v783 = vadd.f32 0.0, %v782
        %v784 = vpop.f32.mrb[0].mxu0
        %785 = vmatprep.mubr.f32.mxu0 0.0
        %786 = vmatmul.mubr.f32.gmra.mrb[0].mxu0 %v661
        %v787 = vpop.f32.mrb[0].mxu0
        %v788 = vadd.f32 0.0, %v787
        %v789 = vpop.f32.mrb[0].mxu0
        %790 = vmatprep.mubr.f32.mxu0 0.0
        %791 = vmatmul.mubr.f32.gmra.mrb[0].mxu0 %v663
        %v792 = vpop.f32.mrb[0].mxu0
        %v793 = vadd.f32 0.0, %v792
        %v794 = vpop.f32.mrb[0].mxu0
        %795 = vmatprep.mubr.f32.mxu0 0.0
        %796 = vmatmul.mubr.f32.gmra.mrb[0].mxu0 %v665
        %v797 = vpop.f32.mrb[0].mxu0
        %v798 = vadd.f32 0.0, %v797
        %v799 = vpop.f32.mrb[0].mxu0
        %800 = vmatprep.mubr.f32.mxu0 0.0
        %801 = vmatmul.mubr.f32.gmra.mrb[0].mxu0 %v667
        %v802 = vpop.f32.mrb[0].mxu0
        %v803 = vadd.f32 0.0, %v802
        %v804 = vpop.f32.mrb[0].mxu0
        %805 = vmatprep.mubr.f32.mxu0 0.0
        %806 = vmatmul.mubr.f32.gmra.mrb[0].mxu0 %v669
        %v807 = vpop.f32.mrb[0].mxu0
        %v808 = vadd.f32 0.0, %v807
        %v809 = vpop.f32.mrb[0].mxu0
        %810 = vmatprep.mubr.f32.mxu0 0.0
        %811 = vmatmul.mubr.f32.gmra.mrb[0].mxu0 %v671
        %v812 = vpop.f32.mrb[0].mxu0
        %v813 = vadd.f32 0.0, %v812
        %v814 = vpop.f32.mrb[0].mxu0
        %815 = vmatprep.mubr.f32.mxu0 0.0
        %816 = vmatmul.mubr.f32.gmra.mrb[0].mxu0 %v673
        %v817 = vpop.f32.mrb[0].mxu0
        %v818 = vadd.f32 0.0, %v817
        %v819 = vpop.f32.mrb[0].mxu0
        %820 = vmatprep.mubr.f32.mxu0 0.0
        %821 = vmatmul.mubr.f32.gmra.mrb[0].mxu0 %v675
        %v822 = vpop.f32.mrb[0].mxu0
        %v823 = vadd.f32 0.0, %v822
        %v824 = vpop.f32.mrb[0].mxu0
        %825 = vdwg.mxu0
        %vm826 = vcmp.gt.f32.partialorder %v144, 0.0
        %vm827 = vcmp.gt.f32.partialorder %v145, 0.0
        %vm828 = vcmp.gt.f32.partialorder %v146, 0.0
        %vm829 = vcmp.gt.f32.partialorder %v147, 0.0
        %vm830 = vcmp.gt.f32.partialorder %v148, 0.0
        %vm831 = vcmp.gt.f32.partialorder %v149, 0.0
        %vm832 = vcmp.gt.f32.partialorder %v150, 0.0
        %vm833 = vcmp.gt.f32.partialorder %v151, 0.0
        %vm834 = vcmp.gt.f32.partialorder %v152, 0.0
        %vm835 = vcmp.gt.f32.partialorder %v153, 0.0
        %vm836 = vcmp.gt.f32.partialorder %v154, 0.0
        %vm837 = vcmp.gt.f32.partialorder %v155, 0.0
        %vm838 = vcmp.gt.f32.partialorder %v156, 0.0
        %vm839 = vcmp.gt.f32.partialorder %v157, 0.0
        %vm840 = vcmp.gt.f32.partialorder %v158, 0.0
        %vm841 = vcmp.gt.f32.partialorder %v159, 0.0
        %858 = vrot.lane.b32.xlu0 %v748, 32
        %v859 = vpop.permute.xlu0 %858
        %860 = vrot.lane.b32.xlu0 %v753, 32
        %v861 = vpop.permute.xlu0 %860
        %862 = vrot.lane.b32.xlu0 %v758, 32
        %v863 = vpop.permute.xlu0 %862
        %864 = vrot.lane.b32.xlu0 %v763, 32
        %v865 = vpop.permute.xlu0 %864
        %866 = vrot.lane.b32.xlu0 %v768, 32
        %v867 = vpop.permute.xlu0 %866
        %868 = vrot.lane.b32.xlu0 %v773, 32
        %v869 = vpop.permute.xlu0 %868
        %870 = vrot.lane.b32.xlu0 %v778, 32
        %v871 = vpop.permute.xlu0 %870
        %872 = vrot.lane.b32.xlu0 %v783, 32
        %v873 = vpop.permute.xlu0 %872
        %874 = vrot.lane.b32.xlu0 %v788, 32
        %v875 = vpop.permute.xlu0 %874
        %876 = vrot.lane.b32.xlu0 %v793, 32
        %v877 = vpop.permute.xlu0 %876
        %878 = vrot.lane.b32.xlu0 %v798, 32
        %v879 = vpop.permute.xlu0 %878
        %880 = vrot.lane.b32.xlu0 %v803, 32
        %v881 = vpop.permute.xlu0 %880
        %882 = vrot.lane.b32.xlu0 %v808, 32
        %v883 = vpop.permute.xlu0 %882
        %884 = vrot.lane.b32.xlu0 %v813, 32
        %v885 = vpop.permute.xlu0 %884
        %886 = vrot.lane.b32.xlu0 %v818, 32
        %v887 = vpop.permute.xlu0 %886
        %888 = vrot.lane.b32.xlu0 %v823, 32
        %v889 = vpop.permute.xlu0 %888
        %v906 = vsel %vm826, %v859, -1e+30
        %v907 = vsel %vm827, %v861, -1e+30
        %v908 = vsel %vm828, %v863, -1e+30
        %v909 = vsel %vm829, %v865, -1e+30
        %v910 = vsel %vm830, %v867, -1e+30
        %v911 = vsel %vm831, %v869, -1e+30
        %v912 = vsel %vm832, %v871, -1e+30
        %v913 = vsel %vm833, %v873, -1e+30
        %v914 = vsel %vm834, %v875, -1e+30
        %v915 = vsel %vm835, %v877, -1e+30
        %v916 = vsel %vm836, %v879, -1e+30
        %v917 = vsel %vm837, %v881, -1e+30
        %v918 = vsel %vm838, %v883, -1e+30
        %v919 = vsel %vm839, %v885, -1e+30
        %v920 = vsel %vm840, %v887, -1e+30
        %v921 = vsel %vm841, %v889, -1e+30
        %vm922 = vcmask 523520
        %v923 = vsel %vm922, %v906, -inf
        %v924 = vsel %vm922, %v907, -inf
        %v925 = vsel %vm922, %v908, -inf
        %v926 = vsel %vm922, %v909, -inf
        %v927 = vsel %vm922, %v910, -inf
        %v928 = vmax.f32 %v923, %v927
        %v929 = vsel %vm922, %v911, -inf
        %v930 = vmax.f32 %v924, %v929
        %v931 = vsel %vm922, %v912, -inf
        %v932 = vmax.f32 %v925, %v931
        %v933 = vsel %vm922, %v913, -inf
        %v934 = vmax.f32 %v926, %v933
        %v935 = vsel %vm922, %v914, -inf
        %v936 = vmax.f32 %v928, %v935
        %v937 = vsel %vm922, %v915, -inf
        %v938 = vmax.f32 %v930, %v937
        %v939 = vsel %vm922, %v916, -inf
        %v940 = vmax.f32 %v932, %v939
        %v941 = vsel %vm922, %v917, -inf
        %v942 = vmax.f32 %v934, %v941
        %v943 = vsel %vm922, %v918, -inf
        %v944 = vmax.f32 %v936, %v943
        %v945 = vsel %vm922, %v919, -inf
        %v946 = vmax.f32 %v938, %v945
        %v947 = vsel %vm922, %v920, -inf
        %v948 = vmax.f32 %v940, %v947
        %v949 = vsel %vm922, %v921, -inf
        %v950 = vmax.f32 %v942, %v949
        %v951 = vmax.f32 %v944, %v946
        %v952 = vmax.f32 %v948, %v950
        %v953 = vmax.f32 %v951, %v952
        %v954 = vrot.slane %v953, 4
        %v955 = vmax.f32 %v953, %v954
        %v956 = vrot.slane %v955, 2
        %v957 = vmax.f32 %v955, %v956
        %v958 = vrot.slane %v957, 1
        %v959 = vmax.f32 %v957, %v958
        %v960 = vsub.f32 %v906, %v959
        %v961 = vsub.f32 %v907, %v959
        %v962 = vsub.f32 %v908, %v959
        %v963 = vsub.f32 %v909, %v959
        %v964 = vsub.f32 %v910, %v959
        %v965 = vsub.f32 %v911, %v959
        %v966 = vsub.f32 %v912, %v959
        %v967 = vsub.f32 %v913, %v959
        %v968 = vsub.f32 %v914, %v959
        %v969 = vsub.f32 %v915, %v959
        %v970 = vsub.f32 %v916, %v959
        %v971 = vsub.f32 %v917, %v959
        %v972 = vsub.f32 %v918, %v959
        %v973 = vsub.f32 %v919, %v959
        %v974 = vsub.f32 %v920, %v959
        %v975 = vsub.f32 %v921, %v959
        %v976 = vmul.f32 %v960, 1.442695
        %v977 = vpow.pop %v976
        %v978 = vmul.f32 %v961, 1.442695
        %v979 = vpow.pop %v978
        %v980 = vmul.f32 %v962, 1.442695
        %v981 = vpow.pop %v980
        %v982 = vmul.f32 %v963, 1.442695
        %v983 = vpow.pop %v982
        %v984 = vmul.f32 %v964, 1.442695
        %v985 = vpow.pop %v984
        %v986 = vmul.f32 %v965, 1.442695
        %v987 = vpow.pop %v986
        %v988 = vmul.f32 %v966, 1.442695
        %v989 = vpow.pop %v988
        %v990 = vmul.f32 %v967, 1.442695
        %v991 = vpow.pop %v990
        %v992 = vmul.f32 %v968, 1.442695
        %v993 = vpow.pop %v992
        %v994 = vmul.f32 %v969, 1.442695
        %v995 = vpow.pop %v994
        %v996 = vmul.f32 %v970, 1.442695
        %v997 = vpow.pop %v996
        %v998 = vmul.f32 %v971, 1.442695
        %v999 = vpow.pop %v998
        %v1000 = vmul.f32 %v972, 1.442695
        %v1001 = vpow.pop %v1000
        %v1002 = vmul.f32 %v973, 1.442695
        %v1003 = vpow.pop %v1002
        %v1004 = vmul.f32 %v974, 1.442695
        %v1005 = vpow.pop %v1004
        %v1006 = vmul.f32 %v975, 1.442695
        %v1007 = vpow.pop %v1006
        %v1008 = vmul.f32 %v977, %v144
        %v1009 = vmul.f32 %v979, %v145
        %v1010 = vmul.f32 %v981, %v146
        %v1011 = vmul.f32 %v983, %v147
        %v1012 = vmul.f32 %v985, %v148
        %v1013 = vmul.f32 %v987, %v149
        %v1014 = vmul.f32 %v989, %v150
        %v1015 = vmul.f32 %v991, %v151
        %v1016 = vmul.f32 %v993, %v152
        %v1017 = vmul.f32 %v995, %v153
        %v1018 = vmul.f32 %v997, %v154
        %v1019 = vmul.f32 %v999, %v155
        %v1020 = vmul.f32 %v1001, %v156
        %v1021 = vmul.f32 %v1003, %v157
        %v1022 = vmul.f32 %v1005, %v158
        %v1023 = vmul.f32 %v1007, %v159
        %v1024 = vsel %vm922, %v1008, 0.0
        %v1025 = vsel %vm922, %v1009, 0.0
        %v1026 = vadd.f32 %v1024, %v1025
        %v1027 = vsel %vm922, %v1010, 0.0
        %v1028 = vadd.f32 %v1026, %v1027
        %v1029 = vsel %vm922, %v1011, 0.0
        %v1030 = vadd.f32 %v1028, %v1029
        %v1031 = vsel %vm922, %v1012, 0.0
        %v1032 = vadd.f32 %v1030, %v1031
        %v1033 = vsel %vm922, %v1013, 0.0
        %v1034 = vadd.f32 %v1032, %v1033
        %v1035 = vsel %vm922, %v1014, 0.0
        %v1036 = vadd.f32 %v1034, %v1035
        %v1037 = vsel %vm922, %v1015, 0.0
        %v1038 = vadd.f32 %v1036, %v1037
        %v1039 = vsel %vm922, %v1016, 0.0
        %v1040 = vadd.f32 %v1038, %v1039
        %v1041 = vsel %vm922, %v1017, 0.0
        %v1042 = vadd.f32 %v1040, %v1041
        %v1043 = vsel %vm922, %v1018, 0.0
        %v1044 = vadd.f32 %v1042, %v1043
        %v1045 = vsel %vm922, %v1019, 0.0
        %v1046 = vadd.f32 %v1044, %v1045
        %v1047 = vsel %vm922, %v1020, 0.0
        %v1048 = vadd.f32 %v1046, %v1047
        %v1049 = vsel %vm922, %v1021, 0.0
        %v1050 = vadd.f32 %v1048, %v1049
        %v1051 = vsel %vm922, %v1022, 0.0
        %v1052 = vadd.f32 %v1050, %v1051
        %v1053 = vsel %vm922, %v1023, 0.0
        %v1054 = vadd.f32 %v1052, %v1053
        %v1055 = vrot.slane %v1054, 4
        %v1056 = vadd.f32 %v1054, %v1055
        %v1057 = vrot.slane %v1056, 2
        %v1058 = vadd.f32 %v1056, %v1057
        %v1059 = vrot.slane %v1058, 1
        %v1060 = vadd.f32 %v1058, %v1059
        %v1061 = vadd.f32 %v1060, 1e-12
        %v1062 = vrcp.pop %v1061
        %v1063 = vmul.f32 %v1008, %v1062
        %v1064 = vmul.f32 %v1009, %v1062
        %v1065 = vmul.f32 %v1010, %v1062
        %v1066 = vmul.f32 %v1011, %v1062
        %v1067 = vmul.f32 %v1012, %v1062
        %v1068 = vmul.f32 %v1013, %v1062
        %v1069 = vmul.f32 %v1014, %v1062
        %v1070 = vmul.f32 %v1015, %v1062
        %v1071 = vmul.f32 %v1016, %v1062
        %v1072 = vmul.f32 %v1017, %v1062
        %v1073 = vmul.f32 %v1018, %v1062
        %v1074 = vmul.f32 %v1019, %v1062
        %v1075 = vmul.f32 %v1020, %v1062
        %v1076 = vmul.f32 %v1021, %v1062
        %v1077 = vmul.f32 %v1022, %v1062
        %v1078 = vmul.f32 %v1023, %v1062
        %1095 = vrot.lane.b32.xlu0 %v1063, 96
        %v1096 = vpop.permute.xlu0 %1095
        %1097 = vrot.lane.b32.xlu0 %v1064, 96
        %v1098 = vpop.permute.xlu0 %1097
        %1099 = vrot.lane.b32.xlu0 %v1065, 96
        %v1100 = vpop.permute.xlu0 %1099
        %1101 = vrot.lane.b32.xlu0 %v1066, 96
        %v1102 = vpop.permute.xlu0 %1101
        %1103 = vrot.lane.b32.xlu0 %v1067, 96
        %v1104 = vpop.permute.xlu0 %1103
        %1105 = vrot.lane.b32.xlu0 %v1068, 96
        %v1106 = vpop.permute.xlu0 %1105
        %1107 = vrot.lane.b32.xlu0 %v1069, 96
        %v1108 = vpop.permute.xlu0 %1107
        %1109 = vrot.lane.b32.xlu0 %v1070, 96
        %v1110 = vpop.permute.xlu0 %1109
        %1111 = vrot.lane.b32.xlu0 %v1071, 96
        %v1112 = vpop.permute.xlu0 %1111
        %1113 = vrot.lane.b32.xlu0 %v1072, 96
        %v1114 = vpop.permute.xlu0 %1113
        %1115 = vrot.lane.b32.xlu0 %v1073, 96
        %v1116 = vpop.permute.xlu0 %1115
        %1117 = vrot.lane.b32.xlu0 %v1074, 96
        %v1118 = vpop.permute.xlu0 %1117
        %1119 = vrot.lane.b32.xlu0 %v1075, 96
        %v1120 = vpop.permute.xlu0 %1119
        %1121 = vrot.lane.b32.xlu0 %v1076, 96
        %v1122 = vpop.permute.xlu0 %1121
        %1123 = vrot.lane.b32.xlu0 %v1077, 96
        %v1124 = vpop.permute.xlu0 %1123
        %1125 = vrot.lane.b32.xlu0 %v1078, 96
        %v1126 = vpop.permute.xlu0 %1125
        %1143 = vxpose.xlu0.b32.start [1/16] %v1096, 128
        %1144 = vxpose.xlu0.b32.cont [2/16] %v1098, 128
        %1145 = vxpose.xlu0.b32.cont [3/16] %v1100, 128
        %1146 = vxpose.xlu0.b32.cont [4/16] %v1102, 128
        %1147 = vxpose.xlu0.b32.cont [5/16] %v1104, 128
        %1148 = vxpose.xlu0.b32.cont [6/16] %v1106, 128
        %1149 = vxpose.xlu0.b32.cont [7/16] %v1108, 128
        %1150 = vxpose.xlu0.b32.cont [8/16] %v1110, 128
        %1151 = vxpose.xlu0.b32.cont [9/16] %v1112, 128
        %1152 = vxpose.xlu0.b32.cont [10/16] %v1114, 128
        %1153 = vxpose.xlu0.b32.cont [11/16] %v1116, 128
        %1154 = vxpose.xlu0.b32.cont [12/16] %v1118, 128
        %1155 = vxpose.xlu0.b32.cont [13/16] %v1120, 128
        %1156 = vxpose.xlu0.b32.cont [14/16] %v1122, 128
        %1157 = vxpose.xlu0.b32.cont [15/16] %v1124, 128
        %1158 = vxpose.xlu0.b32.end [16/16] %v1126, 128
        %v1159 = vpop.trf.xlu0
        %v1160 = vpop.trf.xlu0
        %v1161 = vpop.trf.xlu0
        %v1162 = vpop.trf.xlu0
        %v1163 = vpop.trf.xlu0
        %v1164 = vpop.trf.xlu0
        %v1165 = vpop.trf.xlu0
        %v1166 = vpop.trf.xlu0
        %v1167 = vpop.trf.xlu0
        %v1168 = vpop.trf.xlu0
        %v1169 = vpop.trf.xlu0
        %v1170 = vpop.trf.xlu0
        %v1171 = vpop.trf.xlu0
        %v1172 = vpop.trf.xlu0
        %v1173 = vpop.trf.xlu0
        %v1174 = vpop.trf.xlu0
        %1175 = vmatprep.subr.mxu0 0.0
        %1176 = vmatpush1.msra.mxu0 %v518
        %1177 = vmatprep.subr.mxu0 0.0
        %1178 = vmatpush1.msra.mxu0 %v523
        %1179 = vmatprep.subr.mxu0 0.0
        %1180 = vmatpush1.msra.mxu0 %v528
        %1181 = vmatprep.subr.mxu0 0.0
        %1182 = vmatpush1.msra.mxu0 %v533
        %1183 = vmatprep.subr.mxu0 0.0
        %1184 = vmatpush1.msra.mxu0 %v538
        %1185 = vmatprep.subr.mxu0 0.0
        %1186 = vmatpush1.msra.mxu0 %v543
        %1187 = vmatprep.subr.mxu0 0.0
        %1188 = vmatpush1.msra.mxu0 %v548
        %1189 = vmatprep.subr.mxu0 0.0
        %1190 = vmatpush1.msra.mxu0 %v553
        %1191 = vmatprep.subr.mxu0 0.0
        %1192 = vmatpush1.msra.mxu0 %v558
        %1193 = vmatprep.subr.mxu0 0.0
        %1194 = vmatpush1.msra.mxu0 %v563
        %1195 = vmatprep.subr.mxu0 0.0
        %1196 = vmatpush1.msra.mxu0 %v568
        %1197 = vmatprep.subr.mxu0 0.0
        %1198 = vmatpush1.msra.mxu0 %v573
        %1199 = vmatprep.subr.mxu0 0.0
        %1200 = vmatpush1.msra.mxu0 %v578
        %1201 = vmatprep.subr.mxu0 0.0
        %1202 = vmatpush1.msra.mxu0 %v583
        %1203 = vmatprep.subr.mxu0 0.0
        %1204 = vmatpush1.msra.mxu0 %v588
        %1205 = vmatprep.subr.mxu0 0.0
        %1206 = vmatpush1.msra.mxu0 %v593
        %1207 = vmatprep.subr.mxu0 0.0
        %1208 = vmatpush1.msra.mxu0 0.0
        %1209 = vmatprep.subr.mxu0 0.0
        %1210 = vmatpush1.msra.mxu0 0.0
        %1211 = vmatprep.subr.mxu0 0.0
        %1212 = vmatpush1.msra.mxu0 0.0
        %1213 = vmatprep.subr.mxu0 0.0
        %1214 = vmatpush1.msra.mxu0 0.0
        %1215 = vmatprep.subr.mxu0 0.0
        %1216 = vmatpush1.msra.mxu0 0.0
        %1217 = vmatprep.subr.mxu0 0.0
        %1218 = vmatpush1.msra.mxu0 0.0
        %1219 = vmatprep.subr.mxu0 0.0
        %1220 = vmatpush1.msra.mxu0 0.0
        %1221 = vmatprep.subr.mxu0 0.0
        %1222 = vmatpush1.msra.mxu0 0.0
        %1223 = vmatprep.subr.mxu0 0.0
        %1224 = vmatpush1.msra.mxu0 0.0
        %1225 = vmatprep.subr.mxu0 0.0
        %1226 = vmatpush1.msra.mxu0 0.0
        %1227 = vmatprep.subr.mxu0 0.0
        %1228 = vmatpush1.msra.mxu0 0.0
        %1229 = vmatprep.subr.mxu0 0.0
        %1230 = vmatpush1.msra.mxu0 0.0
        %1231 = vmatprep.subr.mxu0 0.0
        %1232 = vmatpush1.msra.mxu0 0.0
        %1233 = vmatprep.subr.mxu0 0.0
        %1234 = vmatpush1.msra.mxu0 0.0
        %1235 = vmatprep.subr.mxu0 0.0
        %1236 = vmatpush1.msra.mxu0 0.0
        %1237 = vmatprep.subr.mxu0 0.0
        %1238 = vmatpush1.msra.mxu0 0.0
        %1239 = vmatprep.mubr.f32.mxu0 0.0
        %1240 = vmatmul.mubr.f32.gmra.mrb[0].mxu0 %v1159
        %v1241 = vpop.f32.mrb[0].mxu0
        %v1242 = vadd.f32 0.0, %v1241
        %v1243 = vpop.f32.mrb[0].mxu0
        %1244 = vmatprep.mubr.f32.mxu0 0.0
        %1245 = vmatmul.mubr.f32.gmra.mrb[0].mxu0 %v1160
        %v1246 = vpop.f32.mrb[0].mxu0
        %v1247 = vadd.f32 0.0, %v1246
        %v1248 = vpop.f32.mrb[0].mxu0
        %1249 = vmatprep.mubr.f32.mxu0 0.0
        %1250 = vmatmul.mubr.f32.gmra.mrb[0].mxu0 %v1161
        %v1251 = vpop.f32.mrb[0].mxu0
        %v1252 = vadd.f32 0.0, %v1251
        %v1253 = vpop.f32.mrb[0].mxu0
        %1254 = vmatprep.mubr.f32.mxu0 0.0
        %1255 = vmatmul.mubr.f32.gmra.mrb[0].mxu0 %v1162
        %v1256 = vpop.f32.mrb[0].mxu0
        %v1257 = vadd.f32 0.0, %v1256
        %v1258 = vpop.f32.mrb[0].mxu0
        %1259 = vdwg.mxu0
        %v1260 = vmul.f32 %v1242, %v179
        %v1261 = vmul.f32 %v1247, %v180
        %v1262 = vmul.f32 %v1252, %v181
        %v1263 = vmul.f32 %v1257, %v182
        %v1265 = vsel %vm402, %v183, 0
        %1267 = vmatprep.subr.mxu0 0.0
        %1268 = vmatpush1.msra.mxu0 %v1260
        %1269 = vmatprep.subr.mxu0 0.0
        %1270 = vmatpush1.msra.mxu0 %v1261
        %1271 = vmatprep.subr.mxu0 0.0
        %1272 = vmatpush1.msra.mxu0 %v1262
        %1273 = vmatprep.subr.mxu0 0.0
        %1274 = vmatpush1.msra.mxu0 %v1263
        %1275 = vmatprep.subr.mxu0 0.0
        %1276 = vmatpush1.msra.mxu0 0.0
        %1277 = vmatprep.subr.mxu0 0.0
        %1278 = vmatpush1.msra.mxu0 0.0
        %1279 = vmatprep.subr.mxu0 0.0
        %1280 = vmatpush1.msra.mxu0 0.0
        %1281 = vmatprep.subr.mxu0 0.0
        %1282 = vmatpush1.msra.mxu0 0.0
        %1283 = vmatprep.subr.mxu0 0.0
        %1284 = vmatpush1.msra.mxu0 0.0
        %1285 = vmatprep.subr.mxu0 0.0
        %1286 = vmatpush1.msra.mxu0 0.0
        %1287 = vmatprep.subr.mxu0 0.0
        %1288 = vmatpush1.msra.mxu0 0.0
        %1289 = vmatprep.subr.mxu0 0.0
        %1290 = vmatpush1.msra.mxu0 0.0
        %1291 = vmatprep.subr.mxu0 0.0
        %1292 = vmatpush1.msra.mxu0 0.0
        %1293 = vmatprep.subr.mxu0 0.0
        %1294 = vmatpush1.msra.mxu0 0.0
        %1295 = vmatprep.subr.mxu0 0.0
        %1296 = vmatpush1.msra.mxu0 0.0
        %1297 = vmatprep.subr.mxu0 0.0
        %1298 = vmatpush1.msra.mxu0 0.0
        %1299 = vmatprep.subr.mxu0 0.0
        %1300 = vmatpush1.msra.mxu0 0.0
        %1301 = vmatprep.subr.mxu0 0.0
        %1302 = vmatpush1.msra.mxu0 0.0
        %1303 = vmatprep.subr.mxu0 0.0
        %1304 = vmatpush1.msra.mxu0 0.0
        %1305 = vmatprep.subr.mxu0 0.0
        %1306 = vmatpush1.msra.mxu0 0.0
        %1307 = vmatprep.subr.mxu0 0.0
        %1308 = vmatpush1.msra.mxu0 0.0
        %1309 = vmatprep.subr.mxu0 0.0
        %1310 = vmatpush1.msra.mxu0 0.0
        %1311 = vmatprep.subr.mxu0 0.0
        %1312 = vmatpush1.msra.mxu0 0.0
        %1313 = vmatprep.subr.mxu0 0.0
        %1314 = vmatpush1.msra.mxu0 0.0
        %1315 = vmatprep.subr.mxu0 0.0
        %1316 = vmatpush1.msra.mxu0 0.0
        %1317 = vmatprep.subr.mxu0 0.0
        %1318 = vmatpush1.msra.mxu0 0.0
        %1319 = vmatprep.subr.mxu0 0.0
        %1320 = vmatpush1.msra.mxu0 0.0
        %1321 = vmatprep.subr.mxu0 0.0
        %1322 = vmatpush1.msra.mxu0 0.0
        %1323 = vmatprep.subr.mxu0 0.0
        %1324 = vmatpush1.msra.mxu0 0.0
        %1325 = vmatprep.subr.mxu0 0.0
        %1326 = vmatpush1.msra.mxu0 0.0
        %1327 = vmatprep.subr.mxu0 0.0
        %1328 = vmatpush1.msra.mxu0 0.0
        %1329 = vmatprep.subr.mxu0 0.0
        %1330 = vmatpush1.msra.mxu0 0.0
        %1331 = vmatprep.mubr.f32.mxu0 0.0
        %1332 = vmatmul.mubr.f32.gmra.mrb[0].mxu0 %v1265
        %v1333 = vpop.f32.mrb[0].mxu0
        %v1334 = vadd.f32 0.0, %v1333
        %v1335 = vpop.f32.mrb[0].mxu0
        %1336 = vdwg.mxu0
        %v1337 = vlaneseq
        %v1338 = vshrl.u32 %v1337, 7
        %v1339 = vsub.s32 0, %v1338
        %v1340 = vrot.slane %v172, %v1339
        %v1342 = vsel %vm402, %v1334, 0
        %1344 = vmatprep.subr.mxu0 0.0
        %1345 = vmatpush1.msra.mxu0 %v168
        %1346 = vmatprep.subr.mxu0 0.0
        %1347 = vmatpush1.msra.mxu0 %v169
        %1348 = vmatprep.subr.mxu0 0.0
        %1349 = vmatpush1.msra.mxu0 %v170
        %1350 = vmatprep.subr.mxu0 0.0
        %1351 = vmatpush1.msra.mxu0 %v171
        %1352 = vmatprep.subr.mxu0 0.0
        %1353 = vmatpush1.msra.mxu0 0.0
        %1354 = vmatprep.subr.mxu0 0.0
        %1355 = vmatpush1.msra.mxu0 0.0
        %1356 = vmatprep.subr.mxu0 0.0
        %1357 = vmatpush1.msra.mxu0 0.0
        %1358 = vmatprep.subr.mxu0 0.0
        %1359 = vmatpush1.msra.mxu0 0.0
        %1360 = vmatprep.subr.mxu0 0.0
        %1361 = vmatpush1.msra.mxu0 0.0
        %1362 = vmatprep.subr.mxu0 0.0
        %1363 = vmatpush1.msra.mxu0 0.0
        %1364 = vmatprep.subr.mxu0 0.0
        %1365 = vmatpush1.msra.mxu0 0.0
        %1366 = vmatprep.subr.mxu0 0.0
        %1367 = vmatpush1.msra.mxu0 0.0
        %1368 = vmatprep.subr.mxu0 0.0
        %1369 = vmatpush1.msra.mxu0 0.0
        %1370 = vmatprep.subr.mxu0 0.0
        %1371 = vmatpush1.msra.mxu0 0.0
        %1372 = vmatprep.subr.mxu0 0.0
        %1373 = vmatpush1.msra.mxu0 0.0
        %1374 = vmatprep.subr.mxu0 0.0
        %1375 = vmatpush1.msra.mxu0 0.0
        %1376 = vmatprep.subr.mxu0 0.0
        %1377 = vmatpush1.msra.mxu0 0.0
        %1378 = vmatprep.subr.mxu0 0.0
        %1379 = vmatpush1.msra.mxu0 0.0
        %1380 = vmatprep.subr.mxu0 0.0
        %1381 = vmatpush1.msra.mxu0 0.0
        %1382 = vmatprep.subr.mxu0 0.0
        %1383 = vmatpush1.msra.mxu0 0.0
        %1384 = vmatprep.subr.mxu0 0.0
        %1385 = vmatpush1.msra.mxu0 0.0
        %1386 = vmatprep.subr.mxu0 0.0
        %1387 = vmatpush1.msra.mxu0 0.0
        %1388 = vmatprep.subr.mxu0 0.0
        %1389 = vmatpush1.msra.mxu0 0.0
        %1390 = vmatprep.subr.mxu0 0.0
        %1391 = vmatpush1.msra.mxu0 0.0
        %1392 = vmatprep.subr.mxu0 0.0
        %1393 = vmatpush1.msra.mxu0 0.0
        %1394 = vmatprep.subr.mxu0 0.0
        %1395 = vmatpush1.msra.mxu0 0.0
        %1396 = vmatprep.subr.mxu0 0.0
        %1397 = vmatpush1.msra.mxu0 0.0
        %1398 = vmatprep.subr.mxu0 0.0
        %1399 = vmatpush1.msra.mxu0 0.0
        %1400 = vmatprep.subr.mxu0 0.0
        %1401 = vmatpush1.msra.mxu0 0.0
        %1402 = vmatprep.subr.mxu0 0.0
        %1403 = vmatpush1.msra.mxu0 0.0
        %1404 = vmatprep.subr.mxu0 0.0
        %1405 = vmatpush1.msra.mxu0 0.0
        %1406 = vmatprep.subr.mxu0 0.0
        %1407 = vmatpush1.msra.mxu0 0.0
        %1408 = vmatprep.mubr.f32.mxu0 0.0
        %1409 = vmatmul.mubr.f32.gmra.mrb[0].mxu0 %v1342
        %v1410 = vpop.f32.mrb[0].mxu0
        %v1411 = vadd.f32 %v1340, %v1410
        %v1412 = vpop.f32.mrb[0].mxu0
        %1413 = vdwg.mxu0
        %v1414 = vmax.f32 %v1411, 0.0
        %v1415 = vlaneseq
        %v1416 = vshrl.u32 %v1415, 7
        %v1417 = vsub.s32 0, %v1416
        %v1418 = vrot.slane %v177, %v1417
        %v1420 = vsel %vm402, %v1414, 0
        %1422 = vmatprep.subr.mxu0 0.0
        %1423 = vmatpush1.msra.mxu0 %v173
        %1424 = vmatprep.subr.mxu0 0.0
        %1425 = vmatpush1.msra.mxu0 %v174
        %1426 = vmatprep.subr.mxu0 0.0
        %1427 = vmatpush1.msra.mxu0 %v175
        %1428 = vmatprep.subr.mxu0 0.0
        %1429 = vmatpush1.msra.mxu0 %v176
        %1430 = vmatprep.subr.mxu0 0.0
        %1431 = vmatpush1.msra.mxu0 0.0
        %1432 = vmatprep.subr.mxu0 0.0
        %1433 = vmatpush1.msra.mxu0 0.0
        %1434 = vmatprep.subr.mxu0 0.0
        %1435 = vmatpush1.msra.mxu0 0.0
        %1436 = vmatprep.subr.mxu0 0.0
        %1437 = vmatpush1.msra.mxu0 0.0
        %1438 = vmatprep.subr.mxu0 0.0
        %1439 = vmatpush1.msra.mxu0 0.0
        %1440 = vmatprep.subr.mxu0 0.0
        %1441 = vmatpush1.msra.mxu0 0.0
        %1442 = vmatprep.subr.mxu0 0.0
        %1443 = vmatpush1.msra.mxu0 0.0
        %1444 = vmatprep.subr.mxu0 0.0
        %1445 = vmatpush1.msra.mxu0 0.0
        %1446 = vmatprep.subr.mxu0 0.0
        %1447 = vmatpush1.msra.mxu0 0.0
        %1448 = vmatprep.subr.mxu0 0.0
        %1449 = vmatpush1.msra.mxu0 0.0
        %1450 = vmatprep.subr.mxu0 0.0
        %1451 = vmatpush1.msra.mxu0 0.0
        %1452 = vmatprep.subr.mxu0 0.0
        %1453 = vmatpush1.msra.mxu0 0.0
        %1454 = vmatprep.subr.mxu0 0.0
        %1455 = vmatpush1.msra.mxu0 0.0
        %1456 = vmatprep.subr.mxu0 0.0
        %1457 = vmatpush1.msra.mxu0 0.0
        %1458 = vmatprep.subr.mxu0 0.0
        %1459 = vmatpush1.msra.mxu0 0.0
        %1460 = vmatprep.subr.mxu0 0.0
        %1461 = vmatpush1.msra.mxu0 0.0
        %1462 = vmatprep.subr.mxu0 0.0
        %1463 = vmatpush1.msra.mxu0 0.0
        %1464 = vmatprep.subr.mxu0 0.0
        %1465 = vmatpush1.msra.mxu0 0.0
        %1466 = vmatprep.subr.mxu0 0.0
        %1467 = vmatpush1.msra.mxu0 0.0
        %1468 = vmatprep.subr.mxu0 0.0
        %1469 = vmatpush1.msra.mxu0 0.0
        %1470 = vmatprep.subr.mxu0 0.0
        %1471 = vmatpush1.msra.mxu0 0.0
        %1472 = vmatprep.subr.mxu0 0.0
        %1473 = vmatpush1.msra.mxu0 0.0
        %1474 = vmatprep.subr.mxu0 0.0
        %1475 = vmatpush1.msra.mxu0 0.0
        %1476 = vmatprep.subr.mxu0 0.0
        %1477 = vmatpush1.msra.mxu0 0.0
        %1478 = vmatprep.subr.mxu0 0.0
        %1479 = vmatpush1.msra.mxu0 0.0
        %1480 = vmatprep.subr.mxu0 0.0
        %1481 = vmatpush1.msra.mxu0 0.0
        %1482 = vmatprep.subr.mxu0 0.0
        %1483 = vmatpush1.msra.mxu0 0.0
        %1484 = vmatprep.subr.mxu0 0.0
        %1485 = vmatpush1.msra.mxu0 0.0
        %1486 = vmatprep.mubr.f32.mxu0 0.0
        %1487 = vmatmul.mubr.f32.gmra.mrb[0].mxu0 %v1420
        %v1488 = vpop.f32.mrb[0].mxu0
        %v1489 = vadd.f32 %v1418, %v1488
        %v1490 = vpop.f32.mrb[0].mxu0
        %1491 = vdwg.mxu0
        %1493 = vrot.lane.b32.xlu0 %v1489, 32
        %v1494 = vpop.permute.xlu0 %1493
        %v1496 = vsel %vm402, %v1334, %v1494
        %vm1497 = vcmask 523264
        %1498 = vst.msk [vmem:[%s137] sm:$0xff] %vm1497, %v1496
        %s1499 = sand.u32 %s71, 1
        %s1500 = scalar_lea.sflag [#allocation3], %s1499
        %s1501 = sand.u32 %s71, 1
        %s1502 = smul.addr %s1501, 8
        %s1503 = scalar_lea.vmem [#allocation2], %s1502
        // Predicated region
        $region29: #{tpu_custom_call.1} parent=27 // pred_check
          %p1504 = pneg %p81
        $region30: #{tpu_custom_call.1} parent=27 // pred_check_branch
          %1506 = sbr.rel (%p1504) target = $region32
        $region31: #{tpu_custom_call.1} parent=27 // pred_region
          %s1508 = ssub.s32 128, 128
          %1509 = vsyncadd %s1500, %s1508
          %s1510 = smul.addr %s16, 128
          %s1511 = scalar_lea.hbm %s2, %s1510
          %s1513 = sshll.u32 %s1503, 4
          %s1514 = int_to_ptr.vmem [resolvable:$true] %s1513
          %1516 = dma.vmem_to_hbm [thread:$0]  %s1514, 128, %s1511, %s1500
        $region32: #{tpu_custom_call.1} parent=27 // pred_fallthru
          _
      $region28: #{tpu_custom_call.1} parent=5 // pred_fallthru
        _
      %p1517 = scmp.le.s32.totalorder 2, %s11
      // Predicated region
      $region33: #{tpu_custom_call.1} parent=5 // pred_check
        %p1518 = pneg %p1517
      $region34: #{tpu_custom_call.1} parent=5 // pred_check_branch
        %1520 = sbr.rel (%p1518) target = $region36
      $region35: #{tpu_custom_call.1} parent=5 // pred_region
        %s1521 = ssub.s32 %s11, 2
        // Predicated region
        $region37: #{tpu_custom_call.1} parent=35 // pred_check
          %p1522 = pneg %p87
        $region38: #{tpu_custom_call.1} parent=35 // pred_check_branch
          %1524 = sbr.rel (%p1522) target = $region40
        $region39: #{tpu_custom_call.1} parent=35 // pred_region
          %s1525 = sand.u32 %s72, 1
          %s1526 = scalar_lea.sflag [#allocation3], %s1525
          %s1527 = sand.u32 %s72, 1
          %s1528 = smul.addr %s1527, 8
          %s1529 = scalar_lea.vmem [#allocation2], %s1528
          %1530 = dma.done %s1526, 128
        $region40: #{tpu_custom_call.1} parent=35 // pred_fallthru
          _
      $region36: #{tpu_custom_call.1} parent=5 // pred_fallthru
        _
    $region6: #{tpu_custom_call.1} parent=1 // loop_footer
      %s15 = sadd.s32 1, %s11
    $region7: #{tpu_custom_call.1} parent=1 // loop_footer_branch
      %10 = sbr.rel target = $region3
    $region8: #{tpu_custom_call.1} parent=1 // loop_exit
      _
    %1531 = vsyncpa [#allocation3], 1
    %s1532 = scalar_lea.sflag [#allocation3], 1
    %1533 = vsyncpa %s1532, 1

</llo_original>
